<compile_context>
chip_gen: v5e
topology: v5e:2x2
jax: 0.10.0
libtpu: 0.0.40
codegen_flags: <defaults>
</compile_context>

<pallas_src>
import functools

import jax
import jax.numpy as jnp
from jax.experimental import pallas as pl
from jax.experimental.pallas import tpu as pltpu


PARAM_ORDER = ('wq', 'bq', 'wk', 'bk', 'wv', 'bv', 'wo', 'bo',
               'g1', 'beta1', 'w1', 'b1', 'w2', 'b2', 'g2', 'beta2')


def _divisor_chunk(total, target):
    """Largest divisor of `total` that is <= target (>= 1)."""
    t = max(1, min(target, total))
    for c in range(t, 0, -1):
        if total % c == 0:
            return c
    return total


def decoder_stack_kernel(x_ref,
                         wq_ref, bq_ref, wk_ref, bk_ref, wv_ref, bv_ref,
                         wo_ref, bo_ref,
                         g1_ref, beta1_ref,
                         w1_ref, b1_ref, w2_ref, b2_ref,
                         g2_ref, beta2_ref,
                         o_ref,
                         x_carry, q_scr, k_scr, v_scr, ctx_scr,
                         *, num_heads, use_mask, kv_chunk, ff_chunk, seq_len):
    layer = pl.program_id(1)

    M, D = x_ref.shape                      # M = batch_tile * seq_len
    S = seq_len
    Bt = M // S
    hd = D // num_heads
    inv_sqrt_hd = float(hd) ** -0.5
    d_ff = w1_ref.shape[-1]

    @pl.when(layer == 0)
    def _():
        x_carry[...] = x_ref[...].astype(jnp.float32)

    def layer_norm(v, g_ref, b_ref):
        mu = jnp.mean(v, axis=-1, keepdims=True)
        var = jnp.mean(jnp.square(v - mu), axis=-1, keepdims=True)
        return (v - mu) * jax.lax.rsqrt(var + 1e-5) * g_ref[...] + b_ref[...]

    # ---- QKV projections for the whole batch tile (M dim = Bt*S) ----
    x_bf = x_carry[...].astype(jnp.bfloat16)
    q_scr[...] = (jnp.dot(x_bf, wq_ref[...], preferred_element_type=jnp.float32)
                  + bq_ref[...]).astype(jnp.bfloat16)
    k_scr[...] = (jnp.dot(x_bf, wk_ref[...], preferred_element_type=jnp.float32)
                  + bk_ref[...]).astype(jnp.bfloat16)
    v_scr[...] = (jnp.dot(x_bf, wv_ref[...], preferred_element_type=jnp.float32)
                  + bv_ref[...]).astype(jnp.bfloat16)

    n_kv = S // kv_chunk
    row_ids = jax.lax.broadcasted_iota(jnp.int32, (S, 1), 0)

    # ---- per-sequence attention: KV-chunked online softmax ----
    for b in range(Bt):
        row0 = b * S
        q_b = q_scr[row0:row0 + S, :]                       # (S, D) bf16

        def chunk_body(c, carry, row0=row0, q_b=q_b):
            start = c * kv_chunk
            if not isinstance(start, int):
                start = pl.multiple_of(start, kv_chunk)
            kc = k_scr[pl.ds(row0 + start, kv_chunk), :]    # (kv_chunk, D) bf16
            vc = v_scr[pl.ds(row0 + start, kv_chunk), :]
            if use_mask:
                col_ids = (jax.lax.broadcasted_iota(
                    jnp.int32, (S, kv_chunk), 1) + start)
                keep = row_ids >= col_ids                   # shared by all heads
            out_carry = []
            for h in range(num_heads):
                m_h, l_h, acc_h = carry[h]
                hs = slice(h * hd, (h + 1) * hd)
                s = jax.lax.dot_general(
                    q_b[:, hs], kc[:, hs], (((1,), (1,)), ((), ())),
                    preferred_element_type=jnp.float32) * inv_sqrt_hd
                if use_mask:
                    # torch.tril then masked_fill(scores == 0, -inf)
                    s = jnp.where(keep, s, 0.0)
                    s = jnp.where(s == 0.0, -jnp.inf, s)
                m_new = jnp.maximum(m_h, jnp.max(s, axis=-1, keepdims=True))
                # guard: fully -inf rows must not produce NaN running stats
                m_safe = jnp.where(m_new == -jnp.inf, 0.0, m_new)
                alpha = jnp.exp(m_h - m_safe)
                p = jnp.exp(s - m_safe)
                l_new = alpha * l_h + jnp.sum(p, axis=-1, keepdims=True)
                acc_new = alpha * acc_h + jnp.dot(
                    p.astype(jnp.bfloat16), vc[:, hs],
                    preferred_element_type=jnp.float32)
                out_carry.append((m_new, l_new, acc_new))
            return tuple(out_carry)

        init = tuple((jnp.full((S, 1), -jnp.inf, jnp.float32),
                      jnp.zeros((S, 1), jnp.float32),
                      jnp.zeros((S, hd), jnp.float32))
                     for _ in range(num_heads))
        if n_kv == 1:
            carry = chunk_body(0, init)
        else:
            carry = jax.lax.fori_loop(0, n_kv, chunk_body, init)

        for h in range(num_heads):
            _, l_h, acc_h = carry[h]
            ctx_scr[row0:row0 + S, h * hd:(h + 1) * hd] = (
                acc_h * pl.reciprocal(l_h, approx=True))

    # ---- output projection + residual + norm 1 ----
    attn_out = (jnp.dot(ctx_scr[...].astype(jnp.bfloat16), wo_ref[...],
                        preferred_element_type=jnp.float32) + bo_ref[...])
    x1 = layer_norm(x_carry[...] + attn_out, g1_ref, beta1_ref)
    x_carry[...] = x1
    x1_bf = x1.astype(jnp.bfloat16)

    # ---- feed-forward, chunked over d_ff with an f32 accumulator ----
    n_ff = d_ff // ff_chunk

    def ff_body(c, ff_acc):
        start = c * ff_chunk
        if not isinstance(start, int):
            start = pl.multiple_of(start, ff_chunk)
        h_c = jnp.maximum(
            jnp.dot(x1_bf, w1_ref[:, pl.ds(start, ff_chunk)],
                    preferred_element_type=jnp.float32)
            + b1_ref[:, pl.ds(start, ff_chunk)], 0.0)
        return ff_acc + jnp.dot(h_c.astype(jnp.bfloat16),
                                w2_ref[pl.ds(start, ff_chunk), :],
                                preferred_element_type=jnp.float32)

    ff0 = jnp.zeros((M, D), jnp.float32)
    ff = ff_body(0, ff0) if n_ff == 1 else jax.lax.fori_loop(0, n_ff, ff_body, ff0)
    ff = ff + b2_ref[...]

    # ---- residual + norm 2 ----
    x2 = layer_norm(x_carry[...] + ff, g2_ref, beta2_ref)
    x_carry[...] = x2

    @pl.when(layer == pl.num_programs(1) - 1)
    def _():
        o_ref[...] = x2.astype(o_ref.dtype)


def transformer_decoder(x, params, mask, num_heads, *,
                        kv_chunk=256, ff_chunk=512, batch_tile=None):
    use_mask = mask is not None
    B, S, D = x.shape
    L = params['wq'].shape[0]
    d_ff = params['w1'].shape[-1]

    Bt = B if batch_tile is None else _divisor_chunk(B, batch_tile)
    if Bt != B and (Bt * S) % 8 != 0:       # keep block sublane-aligned
        Bt = B
    nb = B // Bt

    kv_chunk = _divisor_chunk(S, kv_chunk)
    ff_chunk = _divisor_chunk(d_ff, ff_chunk)

    x2d = x.reshape(B * S, D).astype(jnp.float32)

    in_specs = [pl.BlockSpec((Bt * S, D), lambda b, l: (b, 0))]
    args = [x2d]
    for name in PARAM_ORDER:
        p = params[name]
        blk = (pl.Squeezed(),) + p.shape[1:]
        in_specs.append(pl.BlockSpec(blk, lambda b, l: (l, 0, 0)))
        args.append(p)

    kernel = functools.partial(decoder_stack_kernel,
                               num_heads=num_heads, use_mask=use_mask,
                               kv_chunk=kv_chunk, ff_chunk=ff_chunk,
                               seq_len=S)

    # rough VMEM budget: double-buffered per-layer weights + io blocks + scratch
    per_layer_w = sum(params[n].size * params[n].dtype.itemsize // L
                      for n in PARAM_ORDER)
    block_io = Bt * S * D * 4
    scratch = Bt * S * D * (4 + 3 * 2 + 4)
    est = 2 * per_layer_w + 4 * block_io + scratch + (8 << 20)
    vmem_limit = int(min(max(est, 16 << 20), 64 << 20))

    out2d = pl.pallas_call(
        kernel,
        out_shape=jax.ShapeDtypeStruct((B * S, D), jnp.float32),
        grid_spec=pltpu.PrefetchScalarGridSpec(
            num_scalar_prefetch=0,
            grid=(nb, L),                        # layer axis innermost (carried)
            in_specs=in_specs,
            out_specs=pl.BlockSpec((Bt * S, D), lambda b, l: (b, 0)),
            scratch_shapes=[
                pltpu.VMEM((Bt * S, D), jnp.float32),    # activation carry
                pltpu.VMEM((Bt * S, D), jnp.bfloat16),   # q
                pltpu.VMEM((Bt * S, D), jnp.bfloat16),   # k
                pltpu.VMEM((Bt * S, D), jnp.bfloat16),   # v
                pltpu.VMEM((Bt * S, D), jnp.float32),    # ctx
            ]),
        compiler_params=pltpu.CompilerParams(
            dimension_semantics=("parallel", "arbitrary"),
            vmem_limit_bytes=vmem_limit),
    )(*args)
    return out2d.reshape(B, S, D)


def init_params(key, num_layers, d_model, d_ff):
    layers = []
    for _ in range(num_layers):
        keys = jax.random.split(key, 8)
        key = keys[0]

        def lin(k, din, dout):
            # weight stored (in, out) in bf16 so kernel computes x @ W + b
            w = (jax.random.normal(k, (din, dout), jnp.float32) * 0.1
                 ).astype(jnp.bfloat16)
            b = jax.random.normal(jax.random.fold_in(k, 1), (1, dout),
                                  jnp.float32) * 0.1
            return w, b

        wq, bq = lin(keys[1], d_model, d_model)
        wk, bk = lin(keys[2], d_model, d_model)
        wv, bv = lin(keys[3], d_model, d_model)
        wo, bo = lin(keys[4], d_model, d_model)
        w1, b1 = lin(keys[5], d_model, d_ff)
        w2, b2 = lin(keys[6], d_ff, d_model)
        layers.append(dict(
            wq=wq, bq=bq, wk=wk, bk=bk, wv=wv, bv=bv, wo=wo, bo=bo,
            g1=jnp.ones((1, d_model), jnp.float32),
            beta1=jnp.zeros((1, d_model), jnp.float32),
            w1=w1, b1=b1, w2=w2, b2=b2,
            g2=jnp.ones((1, d_model), jnp.float32),
            beta2=jnp.zeros((1, d_model), jnp.float32),
        ))
    return {name: jnp.stack([lp[name] for lp in layers])
            for name in PARAM_ORDER}


def reference_decoder(x, params, mask, num_heads):
    """Pure-jnp f32 reference mirroring the PyTorch module."""
    use_mask = mask is not None
    B, S, D = x.shape
    L = params['wq'].shape[0]
    hd = D // num_heads
    out = x.astype(jnp.float32)

    def ln(v, g, b):
        mu = jnp.mean(v, -1, keepdims=True)
        var = jnp.mean(jnp.square(v - mu), -1, keepdims=True)
        return (v - mu) / jnp.sqrt(var + 1e-5) * g + b

    for l in range(L):
        p = {k: v[l].astype(jnp.float32) for k, v in params.items()}
        q = (out @ p['wq'] + p['bq']).reshape(B, S, num_heads, hd).transpose(0, 2, 1, 3)
        k = (out @ p['wk'] + p['bk']).reshape(B, S, num_heads, hd).transpose(0, 2, 1, 3)
        v = (out @ p['wv'] + p['bv']).reshape(B, S, num_heads, hd).transpose(0, 2, 1, 3)
        scores = jnp.einsum('bhqd,bhkd->bhqk', q, k) / jnp.sqrt(jnp.float32(hd))
        if use_mask:
            tri = jnp.tril(jnp.ones((S, S), bool))
            scores = jnp.where(tri[None, None], scores, 0.0)
            scores = jnp.where(scores == 0.0, -jnp.inf, scores)
        attn = jax.nn.softmax(scores, axis=-1)
        ctx = jnp.einsum('bhqk,bhkd->bhqd', attn, v
                         ).transpose(0, 2, 1, 3).reshape(B, S, D)
        attn_out = ctx @ p['wo'] + p['bo']
        x1 = ln(out + attn_out, p['g1'], p['beta1'])
        h = jax.nn.relu(x1 @ p['w1'] + p['b1'])
        ff = h @ p['w2'] + p['b2']
        out = ln(x1 + ff, p['g2'], p['beta2'])
    return out


if __name__ == "__main__":
    num_layers = 2
    d_model = 32
    num_heads = 4
    d_ff = 64
    batch = 2
    seq = 8

    root = jax.random.PRNGKey(0)
    k_x, k_p = jax.random.split(root)
    x = jax.random.normal(k_x, (batch, seq, d_model), jnp.float32)
    mask = jnp.ones((seq, seq), jnp.float32)   # non-None => causal masking path
    params = init_params(k_p, num_layers, d_model, d_ff)

    out = transformer_decoder(x, params, mask, num_heads)
    out = jax.block_until_ready(out)

    assert out.shape == (batch, seq, d_model)
    assert bool(jnp.all(jnp.isfinite(out)))

    ref = reference_decoder(x, params, mask, num_heads)
    max_err = float(jnp.max(jnp.abs(out - ref)))
    assert max_err < 0.2, f"kernel/reference mismatch: {max_err}"

    print("KERNEL_OK")
</pallas_src>

<mosaic_0001>
module attributes {stable_mosaic.version = 11 : i64} {
  func.func @decoder_stack_kernel(%arg0: i32, %arg1: i32, %arg2: memref<16x32xf32, #tpu.memory_space<vmem>>, %arg3: memref<1x32x32xbf16, #tpu.memory_space<vmem>>, %arg4: memref<1x1x32xf32, #tpu.memory_space<vmem>>, %arg5: memref<1x32x32xbf16, #tpu.memory_space<vmem>>, %arg6: memref<1x1x32xf32, #tpu.memory_space<vmem>>, %arg7: memref<1x32x32xbf16, #tpu.memory_space<vmem>>, %arg8: memref<1x1x32xf32, #tpu.memory_space<vmem>>, %arg9: memref<1x32x32xbf16, #tpu.memory_space<vmem>>, %arg10: memref<1x1x32xf32, #tpu.memory_space<vmem>>, %arg11: memref<1x1x32xf32, #tpu.memory_space<vmem>>, %arg12: memref<1x1x32xf32, #tpu.memory_space<vmem>>, %arg13: memref<1x32x64xbf16, #tpu.memory_space<vmem>>, %arg14: memref<1x1x64xf32, #tpu.memory_space<vmem>>, %arg15: memref<1x64x32xbf16, #tpu.memory_space<vmem>>, %arg16: memref<1x1x32xf32, #tpu.memory_space<vmem>>, %arg17: memref<1x1x32xf32, #tpu.memory_space<vmem>>, %arg18: memref<1x1x32xf32, #tpu.memory_space<vmem>>, %arg19: memref<16x32xf32, #tpu.memory_space<vmem>>, %arg20: memref<16x32xf32, #tpu.memory_space<vmem>>, %arg21: memref<16x32xbf16, #tpu.memory_space<vmem>>, %arg22: memref<16x32xbf16, #tpu.memory_space<vmem>>, %arg23: memref<16x32xbf16, #tpu.memory_space<vmem>>, %arg24: memref<16x32xf32, #tpu.memory_space<vmem>>) attributes {dimension_semantics = [#tpu.dimension_semantics<parallel>, #tpu.dimension_semantics<arbitrary>], iteration_bounds = array<i64: 1, 2>, scalar_prefetch = 0 : i64, scratch_operands = 5 : i64, tpu.core_type = #tpu.core_type<tc>, window_params = [{transform_indices = @transform_0, window_bounds = array<i64: 16, 32>}, {transform_indices = @transform_1, window_bounds = array<i64: 1, 32, 32>}, {transform_indices = @transform_2, window_bounds = array<i64: 1, 1, 32>}, {transform_indices = @transform_3, window_bounds = array<i64: 1, 32, 32>}, {transform_indices = @transform_4, window_bounds = array<i64: 1, 1, 32>}, {transform_indices = @transform_5, window_bounds = array<i64: 1, 32, 32>}, {transform_indices = @transform_6, window_bounds = array<i64: 1, 1, 32>}, {transform_indices = @transform_7, window_bounds = array<i64: 1, 32, 32>}, {transform_indices = @transform_8, window_bounds = array<i64: 1, 1, 32>}, {transform_indices = @transform_9, window_bounds = array<i64: 1, 1, 32>}, {transform_indices = @transform_10, window_bounds = array<i64: 1, 1, 32>}, {transform_indices = @transform_11, window_bounds = array<i64: 1, 32, 64>}, {transform_indices = @transform_12, window_bounds = array<i64: 1, 1, 64>}, {transform_indices = @transform_13, window_bounds = array<i64: 1, 64, 32>}, {transform_indices = @transform_14, window_bounds = array<i64: 1, 1, 32>}, {transform_indices = @transform_15, window_bounds = array<i64: 1, 1, 32>}, {transform_indices = @transform_16, window_bounds = array<i64: 1, 1, 32>}, {transform_indices = @transform_17, window_bounds = array<i64: 16, 32>}]} {
    %c0_i32 = arith.constant 0 : i32
    %0 = arith.cmpi eq, %arg1, %c0_i32 : i32
    %1 = arith.extui %0 : i1 to i32
    %c0_i32_0 = arith.constant 0 : i32
    %2 = arith.cmpi ne, %1, %c0_i32_0 : i32
    scf.if %2 {
      %c0_215 = arith.constant 0 : index
      %c0_216 = arith.constant 0 : index
      %459 = vector.load %arg2[%c0_215, %c0_216] : memref<16x32xf32, #tpu.memory_space<vmem>>, vector<16x32xf32>
      %c0_217 = arith.constant 0 : index
      %c0_218 = arith.constant 0 : index
      %460 = vector.load %arg20[%c0_217, %c0_218] : memref<16x32xf32, #tpu.memory_space<vmem>>, vector<16x32xf32>
      tpu.vector_store %arg20[%c0_217, %c0_218], %459 {strides = array<i32>} : memref<16x32xf32, #tpu.memory_space<vmem>>, vector<16x32xf32>,
    } else {
    }
    %c0 = arith.constant 0 : index
    %c0_1 = arith.constant 0 : index
    %3 = vector.load %arg20[%c0, %c0_1] : memref<16x32xf32, #tpu.memory_space<vmem>>, vector<16x32xf32>
    %4 = arith.truncf %3 : vector<16x32xf32> to vector<16x32xbf16>
    %c0_2 = arith.constant 0 : index
    %c0_3 = arith.constant 0 : index
    %c0_4 = arith.constant 0 : index
    %5 = vector.load %arg3[%c0_2, %c0_3, %c0_4] : memref<1x32x32xbf16, #tpu.memory_space<vmem>>, vector<1x32x32xbf16>
    %6 = vector.shape_cast %5 : vector<1x32x32xbf16> to vector<32x32xbf16>
    %cst = arith.constant dense<0.000000e+00> : vector<16x32xf32>
    %7 = tpu.matmul %4, %6, %cst {dimension_numbers = #tpu.dot_dimension_numbers<[1], [0], [0], [1], [0, 0, 1, 1], [], []>} : vector<16x32xbf16>, vector<32x32xbf16>, vector<16x32xf32> -> vector<16x32xf32>
    %c0_5 = arith.constant 0 : index
    %c0_6 = arith.constant 0 : index
    %c0_7 = arith.constant 0 : index
    %8 = vector.load %arg4[%c0_5, %c0_6, %c0_7] : memref<1x1x32xf32, #tpu.memory_space<vmem>>, vector<1x1x32xf32>
    %9 = vector.shape_cast %8 : vector<1x1x32xf32> to vector<1x32xf32>
    %10 = vector.broadcast %9 : vector<1x32xf32> to vector<16x32xf32>
    %11 = arith.addf %7, %10 : vector<16x32xf32>
    %12 = arith.truncf %11 : vector<16x32xf32> to vector<16x32xbf16>
    %c0_8 = arith.constant 0 : index
    %c0_9 = arith.constant 0 : index
    %13 = vector.load %arg21[%c0_8, %c0_9] : memref<16x32xbf16, #tpu.memory_space<vmem>>, vector<16x32xbf16>
    tpu.vector_store %arg21[%c0_8, %c0_9], %12 {strides = array<i32>} : memref<16x32xbf16, #tpu.memory_space<vmem>>, vector<16x32xbf16>,
    %c0_10 = arith.constant 0 : index
    %c0_11 = arith.constant 0 : index
    %c0_12 = arith.constant 0 : index
    %14 = vector.load %arg5[%c0_10, %c0_11, %c0_12] : memref<1x32x32xbf16, #tpu.memory_space<vmem>>, vector<1x32x32xbf16>
    %15 = vector.shape_cast %14 : vector<1x32x32xbf16> to vector<32x32xbf16>
    %cst_13 = arith.constant dense<0.000000e+00> : vector<16x32xf32>
    %16 = tpu.matmul %4, %15, %cst_13 {dimension_numbers = #tpu.dot_dimension_numbers<[1], [0], [0], [1], [0, 0, 1, 1], [], []>} : vector<16x32xbf16>, vector<32x32xbf16>, vector<16x32xf32> -> vector<16x32xf32>
    %c0_14 = arith.constant 0 : index
    %c0_15 = arith.constant 0 : index
    %c0_16 = arith.constant 0 : index
    %17 = vector.load %arg6[%c0_14, %c0_15, %c0_16] : memref<1x1x32xf32, #tpu.memory_space<vmem>>, vector<1x1x32xf32>
    %18 = vector.shape_cast %17 : vector<1x1x32xf32> to vector<1x32xf32>
    %19 = vector.broadcast %18 : vector<1x32xf32> to vector<16x32xf32>
    %20 = arith.addf %16, %19 : vector<16x32xf32>
    %21 = arith.truncf %20 : vector<16x32xf32> to vector<16x32xbf16>
    %c0_17 = arith.constant 0 : index
    %c0_18 = arith.constant 0 : index
    %22 = vector.load %arg22[%c0_17, %c0_18] : memref<16x32xbf16, #tpu.memory_space<vmem>>, vector<16x32xbf16>
    tpu.vector_store %arg22[%c0_17, %c0_18], %21 {strides = array<i32>} : memref<16x32xbf16, #tpu.memory_space<vmem>>, vector<16x32xbf16>,
    %c0_19 = arith.constant 0 : index
    %c0_20 = arith.constant 0 : index
    %c0_21 = arith.constant 0 : index
    %23 = vector.load %arg7[%c0_19, %c0_20, %c0_21] : memref<1x32x32xbf16, #tpu.memory_space<vmem>>, vector<1x32x32xbf16>
    %24 = vector.shape_cast %23 : vector<1x32x32xbf16> to vector<32x32xbf16>
    %cst_22 = arith.constant dense<0.000000e+00> : vector<16x32xf32>
    %25 = tpu.matmul %4, %24, %cst_22 {dimension_numbers = #tpu.dot_dimension_numbers<[1], [0], [0], [1], [0, 0, 1, 1], [], []>} : vector<16x32xbf16>, vector<32x32xbf16>, vector<16x32xf32> -> vector<16x32xf32>
    %c0_23 = arith.constant 0 : index
    %c0_24 = arith.constant 0 : index
    %c0_25 = arith.constant 0 : index
    %26 = vector.load %arg8[%c0_23, %c0_24, %c0_25] : memref<1x1x32xf32, #tpu.memory_space<vmem>>, vector<1x1x32xf32>
    %27 = vector.shape_cast %26 : vector<1x1x32xf32> to vector<1x32xf32>
    %28 = vector.broadcast %27 : vector<1x32xf32> to vector<16x32xf32>
    %29 = arith.addf %25, %28 : vector<16x32xf32>
    %30 = arith.truncf %29 : vector<16x32xf32> to vector<16x32xbf16>
    %c0_26 = arith.constant 0 : index
    %c0_27 = arith.constant 0 : index
    %31 = vector.load %arg23[%c0_26, %c0_27] : memref<16x32xbf16, #tpu.memory_space<vmem>>, vector<16x32xbf16>
    tpu.vector_store %arg23[%c0_26, %c0_27], %30 {strides = array<i32>} : memref<16x32xbf16, #tpu.memory_space<vmem>>, vector<16x32xbf16>,
    %32 = tpu.iota {dimensions = array<i32: 0>} : vector<8x1xi32>
    %c0_28 = arith.constant 0 : index
    %c0_29 = arith.constant 0 : index
    %33 = vector.load %arg21[%c0_28, %c0_29] : memref<16x32xbf16, #tpu.memory_space<vmem>>, vector<8x32xbf16>
    %cst_30 = arith.constant 0xFF800000 : f32
    %34 = vector.broadcast %cst_30 : f32 to vector<8x1xf32>
    %cst_31 = arith.constant 0.000000e+00 : f32
    %35 = vector.broadcast %cst_31 : f32 to vector<8x1xf32>
    %cst_32 = arith.constant 0.000000e+00 : f32
    %36 = vector.broadcast %cst_32 : f32 to vector<8x8xf32>
    %cst_33 = arith.constant 0xFF800000 : f32
    %37 = vector.broadcast %cst_33 : f32 to vector<8x1xf32>
    %cst_34 = arith.constant 0.000000e+00 : f32
    %38 = vector.broadcast %cst_34 : f32 to vector<8x1xf32>
    %cst_35 = arith.constant 0.000000e+00 : f32
    %39 = vector.broadcast %cst_35 : f32 to vector<8x8xf32>
    %cst_36 = arith.constant 0xFF800000 : f32
    %40 = vector.broadcast %cst_36 : f32 to vector<8x1xf32>
    %cst_37 = arith.constant 0.000000e+00 : f32
    %41 = vector.broadcast %cst_37 : f32 to vector<8x1xf32>
    %cst_38 = arith.constant 0.000000e+00 : f32
    %42 = vector.broadcast %cst_38 : f32 to vector<8x8xf32>
    %cst_39 = arith.constant 0xFF800000 : f32
    %43 = vector.broadcast %cst_39 : f32 to vector<8x1xf32>
    %cst_40 = arith.constant 0.000000e+00 : f32
    %44 = vector.broadcast %cst_40 : f32 to vector<8x1xf32>
    %cst_41 = arith.constant 0.000000e+00 : f32
    %45 = vector.broadcast %cst_41 : f32 to vector<8x8xf32>
    %c0_42 = arith.constant 0 : index
    %c0_43 = arith.constant 0 : index
    %46 = vector.load %arg22[%c0_42, %c0_43] : memref<16x32xbf16, #tpu.memory_space<vmem>>, vector<8x32xbf16>
    %c0_44 = arith.constant 0 : index
    %c0_45 = arith.constant 0 : index
    %47 = vector.load %arg23[%c0_44, %c0_45] : memref<16x32xbf16, #tpu.memory_space<vmem>>, vector<8x32xbf16>
    %48 = tpu.iota {dimensions = array<i32: 1>} : vector<8x8xi32>
    %c0_i32_46 = arith.constant 0 : i32
    %49 = vector.broadcast %c0_i32_46 : i32 to vector<8x8xi32>
    %50 = arith.addi %48, %49 : vector<8x8xi32>
    %51 = vector.broadcast %32 : vector<8x1xi32> to vector<8x8xi32>
    %52 = arith.cmpi sge, %51, %50 : vector<8x8xi32>
    %53 = vector.extract_strided_slice %33 {offsets = [0, 0], sizes = [8, 8], strides = [1, 1]} : vector<8x32xbf16> to vector<8x8xbf16>
    %54 = vector.extract_strided_slice %46 {offsets = [0, 0], sizes = [8, 8], strides = [1, 1]} : vector<8x32xbf16> to vector<8x8xbf16>
    %cst_47 = arith.constant dense<0.000000e+00> : vector<8x8xf32>
    %55 = tpu.matmul %53, %54, %cst_47 {dimension_numbers = #tpu.dot_dimension_numbers<[1], [1], [0], [0], [0, 0, 1, 0], [], []>} : vector<8x8xbf16>, vector<8x8xbf16>, vector<8x8xf32> -> vector<8x8xf32>
    %cst_48 = arith.constant 0.353553385 : f32
    %56 = vector.broadcast %cst_48 : f32 to vector<8x8xf32>
    %57 = arith.mulf %55, %56 : vector<8x8xf32>
    %cst_49 = arith.constant 0.000000e+00 : f32
    %58 = vector.broadcast %cst_49 : f32 to vector<8x8xf32>
    %59 = arith.select %52, %57, %58 : vector<8x8xi1>, vector<8x8xf32>
    %cst_50 = arith.constant 0.000000e+00 : f32
    %60 = vector.broadcast %cst_50 : f32 to vector<8x8xf32>
    %61 = arith.cmpf oeq, %59, %60 : vector<8x8xf32>
    %cst_51 = arith.constant 0xFF800000 : f32
    %62 = vector.broadcast %cst_51 : f32 to vector<8x8xf32>
    %63 = arith.select %61, %62, %59 : vector<8x8xi1>, vector<8x8xf32>
    %cst_52 = arith.constant dense<0xFF800000> : vector<8xf32>
    %64 = vector.multi_reduction <maximumf>, %63, %cst_52 [1] : vector<8x8xf32> to vector<8xf32>
    %65 = vector.shape_cast %64 : vector<8xf32> to vector<8x1xf32>
    %66 = arith.maximumf %34, %65 : vector<8x1xf32>
    %cst_53 = arith.constant 0xFF800000 : f32
    %67 = vector.broadcast %cst_53 : f32 to vector<8x1xf32>
    %68 = arith.cmpf oeq, %66, %67 : vector<8x1xf32>
    %cst_54 = arith.constant 0.000000e+00 : f32
    %69 = vector.broadcast %cst_54 : f32 to vector<8x1xf32>
    %70 = arith.select %68, %69, %66 : vector<8x1xi1>, vector<8x1xf32>
    %71 = arith.subf %34, %70 : vector<8x1xf32>
    %72 = math.exp %71 : vector<8x1xf32>
    %73 = vector.broadcast %70 : vector<8x1xf32> to vector<8x8xf32>
    %74 = arith.subf %63, %73 : vector<8x8xf32>
    %75 = math.exp %74 : vector<8x8xf32>
    %76 = arith.mulf %72, %35 : vector<8x1xf32>
    %cst_55 = arith.constant dense<0.000000e+00> : vector<8xf32>
    %77 = vector.multi_reduction <add>, %75, %cst_55 [1] : vector<8x8xf32> to vector<8xf32>
    %78 = vector.shape_cast %77 : vector<8xf32> to vector<8x1xf32>
    %79 = arith.addf %76, %78 : vector<8x1xf32>
    %80 = vector.broadcast %72 : vector<8x1xf32> to vector<8x8xf32>
    %81 = arith.mulf %80, %36 : vector<8x8xf32>
    %82 = arith.truncf %75 : vector<8x8xf32> to vector<8x8xbf16>
    %83 = vector.extract_strided_slice %47 {offsets = [0, 0], sizes = [8, 8], strides = [1, 1]} : vector<8x32xbf16> to vector<8x8xbf16>
    %cst_56 = arith.constant dense<0.000000e+00> : vector<8x8xf32>
    %84 = tpu.matmul %82, %83, %cst_56 {dimension_numbers = #tpu.dot_dimension_numbers<[1], [0], [0], [1], [0, 0, 1, 1], [], []>} : vector<8x8xbf16>, vector<8x8xbf16>, vector<8x8xf32> -> vector<8x8xf32>
    %85 = arith.addf %81, %84 : vector<8x8xf32>
    %86 = vector.extract_strided_slice %33 {offsets = [0, 8], sizes = [8, 8], strides = [1, 1]} : vector<8x32xbf16> to vector<8x8xbf16>
    %87 = vector.extract_strided_slice %46 {offsets = [0, 8], sizes = [8, 8], strides = [1, 1]} : vector<8x32xbf16> to vector<8x8xbf16>
    %cst_57 = arith.constant dense<0.000000e+00> : vector<8x8xf32>
    %88 = tpu.matmul %86, %87, %cst_57 {dimension_numbers = #tpu.dot_dimension_numbers<[1], [1], [0], [0], [0, 0, 1, 0], [], []>} : vector<8x8xbf16>, vector<8x8xbf16>, vector<8x8xf32> -> vector<8x8xf32>
    %cst_58 = arith.constant 0.353553385 : f32
    %89 = vector.broadcast %cst_58 : f32 to vector<8x8xf32>
    %90 = arith.mulf %88, %89 : vector<8x8xf32>
    %cst_59 = arith.constant 0.000000e+00 : f32
    %91 = vector.broadcast %cst_59 : f32 to vector<8x8xf32>
    %92 = arith.select %52, %90, %91 : vector<8x8xi1>, vector<8x8xf32>
    %cst_60 = arith.constant 0.000000e+00 : f32
    %93 = vector.broadcast %cst_60 : f32 to vector<8x8xf32>
    %94 = arith.cmpf oeq, %92, %93 : vector<8x8xf32>
    %cst_61 = arith.constant 0xFF800000 : f32
    %95 = vector.broadcast %cst_61 : f32 to vector<8x8xf32>
    %96 = arith.select %94, %95, %92 : vector<8x8xi1>, vector<8x8xf32>
    %cst_62 = arith.constant dense<0xFF800000> : vector<8xf32>
    %97 = vector.multi_reduction <maximumf>, %96, %cst_62 [1] : vector<8x8xf32> to vector<8xf32>
    %98 = vector.shape_cast %97 : vector<8xf32> to vector<8x1xf32>
    %99 = arith.maximumf %37, %98 : vector<8x1xf32>
    %cst_63 = arith.constant 0xFF800000 : f32
    %100 = vector.broadcast %cst_63 : f32 to vector<8x1xf32>
    %101 = arith.cmpf oeq, %99, %100 : vector<8x1xf32>
    %cst_64 = arith.constant 0.000000e+00 : f32
    %102 = vector.broadcast %cst_64 : f32 to vector<8x1xf32>
    %103 = arith.select %101, %102, %99 : vector<8x1xi1>, vector<8x1xf32>
    %104 = arith.subf %37, %103 : vector<8x1xf32>
    %105 = math.exp %104 : vector<8x1xf32>
    %106 = vector.broadcast %103 : vector<8x1xf32> to vector<8x8xf32>
    %107 = arith.subf %96, %106 : vector<8x8xf32>
    %108 = math.exp %107 : vector<8x8xf32>
    %109 = arith.mulf %105, %38 : vector<8x1xf32>
    %cst_65 = arith.constant dense<0.000000e+00> : vector<8xf32>
    %110 = vector.multi_reduction <add>, %108, %cst_65 [1] : vector<8x8xf32> to vector<8xf32>
    %111 = vector.shape_cast %110 : vector<8xf32> to vector<8x1xf32>
    %112 = arith.addf %109, %111 : vector<8x1xf32>
    %113 = vector.broadcast %105 : vector<8x1xf32> to vector<8x8xf32>
    %114 = arith.mulf %113, %39 : vector<8x8xf32>
    %115 = arith.truncf %108 : vector<8x8xf32> to vector<8x8xbf16>
    %116 = vector.extract_strided_slice %47 {offsets = [0, 8], sizes = [8, 8], strides = [1, 1]} : vector<8x32xbf16> to vector<8x8xbf16>
    %cst_66 = arith.constant dense<0.000000e+00> : vector<8x8xf32>
    %117 = tpu.matmul %115, %116, %cst_66 {dimension_numbers = #tpu.dot_dimension_numbers<[1], [0], [0], [1], [0, 0, 1, 1], [], []>} : vector<8x8xbf16>, vector<8x8xbf16>, vector<8x8xf32> -> vector<8x8xf32>
    %118 = arith.addf %114, %117 : vector<8x8xf32>
    %119 = vector.extract_strided_slice %33 {offsets = [0, 16], sizes = [8, 8], strides = [1, 1]} : vector<8x32xbf16> to vector<8x8xbf16>
    %120 = vector.extract_strided_slice %46 {offsets = [0, 16], sizes = [8, 8], strides = [1, 1]} : vector<8x32xbf16> to vector<8x8xbf16>
    %cst_67 = arith.constant dense<0.000000e+00> : vector<8x8xf32>
    %121 = tpu.matmul %119, %120, %cst_67 {dimension_numbers = #tpu.dot_dimension_numbers<[1], [1], [0], [0], [0, 0, 1, 0], [], []>} : vector<8x8xbf16>, vector<8x8xbf16>, vector<8x8xf32> -> vector<8x8xf32>
    %cst_68 = arith.constant 0.353553385 : f32
    %122 = vector.broadcast %cst_68 : f32 to vector<8x8xf32>
    %123 = arith.mulf %121, %122 : vector<8x8xf32>
    %cst_69 = arith.constant 0.000000e+00 : f32
    %124 = vector.broadcast %cst_69 : f32 to vector<8x8xf32>
    %125 = arith.select %52, %123, %124 : vector<8x8xi1>, vector<8x8xf32>
    %cst_70 = arith.constant 0.000000e+00 : f32
    %126 = vector.broadcast %cst_70 : f32 to vector<8x8xf32>
    %127 = arith.cmpf oeq, %125, %126 : vector<8x8xf32>
    %cst_71 = arith.constant 0xFF800000 : f32
    %128 = vector.broadcast %cst_71 : f32 to vector<8x8xf32>
    %129 = arith.select %127, %128, %125 : vector<8x8xi1>, vector<8x8xf32>
    %cst_72 = arith.constant dense<0xFF800000> : vector<8xf32>
    %130 = vector.multi_reduction <maximumf>, %129, %cst_72 [1] : vector<8x8xf32> to vector<8xf32>
    %131 = vector.shape_cast %130 : vector<8xf32> to vector<8x1xf32>
    %132 = arith.maximumf %40, %131 : vector<8x1xf32>
    %cst_73 = arith.constant 0xFF800000 : f32
    %133 = vector.broadcast %cst_73 : f32 to vector<8x1xf32>
    %134 = arith.cmpf oeq, %132, %133 : vector<8x1xf32>
    %cst_74 = arith.constant 0.000000e+00 : f32
    %135 = vector.broadcast %cst_74 : f32 to vector<8x1xf32>
    %136 = arith.select %134, %135, %132 : vector<8x1xi1>, vector<8x1xf32>
    %137 = arith.subf %40, %136 : vector<8x1xf32>
    %138 = math.exp %137 : vector<8x1xf32>
    %139 = vector.broadcast %136 : vector<8x1xf32> to vector<8x8xf32>
    %140 = arith.subf %129, %139 : vector<8x8xf32>
    %141 = math.exp %140 : vector<8x8xf32>
    %142 = arith.mulf %138, %41 : vector<8x1xf32>
    %cst_75 = arith.constant dense<0.000000e+00> : vector<8xf32>
    %143 = vector.multi_reduction <add>, %141, %cst_75 [1] : vector<8x8xf32> to vector<8xf32>
    %144 = vector.shape_cast %143 : vector<8xf32> to vector<8x1xf32>
    %145 = arith.addf %142, %144 : vector<8x1xf32>
    %146 = vector.broadcast %138 : vector<8x1xf32> to vector<8x8xf32>
    %147 = arith.mulf %146, %42 : vector<8x8xf32>
    %148 = arith.truncf %141 : vector<8x8xf32> to vector<8x8xbf16>
    %149 = vector.extract_strided_slice %47 {offsets = [0, 16], sizes = [8, 8], strides = [1, 1]} : vector<8x32xbf16> to vector<8x8xbf16>
    %cst_76 = arith.constant dense<0.000000e+00> : vector<8x8xf32>
    %150 = tpu.matmul %148, %149, %cst_76 {dimension_numbers = #tpu.dot_dimension_numbers<[1], [0], [0], [1], [0, 0, 1, 1], [], []>} : vector<8x8xbf16>, vector<8x8xbf16>, vector<8x8xf32> -> vector<8x8xf32>
    %151 = arith.addf %147, %150 : vector<8x8xf32>
    %152 = vector.extract_strided_slice %33 {offsets = [0, 24], sizes = [8, 8], strides = [1, 1]} : vector<8x32xbf16> to vector<8x8xbf16>
    %153 = vector.extract_strided_slice %46 {offsets = [0, 24], sizes = [8, 8], strides = [1, 1]} : vector<8x32xbf16> to vector<8x8xbf16>
    %cst_77 = arith.constant dense<0.000000e+00> : vector<8x8xf32>
    %154 = tpu.matmul %152, %153, %cst_77 {dimension_numbers = #tpu.dot_dimension_numbers<[1], [1], [0], [0], [0, 0, 1, 0], [], []>} : vector<8x8xbf16>, vector<8x8xbf16>, vector<8x8xf32> -> vector<8x8xf32>
    %cst_78 = arith.constant 0.353553385 : f32
    %155 = vector.broadcast %cst_78 : f32 to vector<8x8xf32>
    %156 = arith.mulf %154, %155 : vector<8x8xf32>
    %cst_79 = arith.constant 0.000000e+00 : f32
    %157 = vector.broadcast %cst_79 : f32 to vector<8x8xf32>
    %158 = arith.select %52, %156, %157 : vector<8x8xi1>, vector<8x8xf32>
    %cst_80 = arith.constant 0.000000e+00 : f32
    %159 = vector.broadcast %cst_80 : f32 to vector<8x8xf32>
    %160 = arith.cmpf oeq, %158, %159 : vector<8x8xf32>
    %cst_81 = arith.constant 0xFF800000 : f32
    %161 = vector.broadcast %cst_81 : f32 to vector<8x8xf32>
    %162 = arith.select %160, %161, %158 : vector<8x8xi1>, vector<8x8xf32>
    %cst_82 = arith.constant dense<0xFF800000> : vector<8xf32>
    %163 = vector.multi_reduction <maximumf>, %162, %cst_82 [1] : vector<8x8xf32> to vector<8xf32>
    %164 = vector.shape_cast %163 : vector<8xf32> to vector<8x1xf32>
    %165 = arith.maximumf %43, %164 : vector<8x1xf32>
    %cst_83 = arith.constant 0xFF800000 : f32
    %166 = vector.broadcast %cst_83 : f32 to vector<8x1xf32>
    %167 = arith.cmpf oeq, %165, %166 : vector<8x1xf32>
    %cst_84 = arith.constant 0.000000e+00 : f32
    %168 = vector.broadcast %cst_84 : f32 to vector<8x1xf32>
    %169 = arith.select %167, %168, %165 : vector<8x1xi1>, vector<8x1xf32>
    %170 = arith.subf %43, %169 : vector<8x1xf32>
    %171 = math.exp %170 : vector<8x1xf32>
    %172 = vector.broadcast %169 : vector<8x1xf32> to vector<8x8xf32>
    %173 = arith.subf %162, %172 : vector<8x8xf32>
    %174 = math.exp %173 : vector<8x8xf32>
    %175 = arith.mulf %171, %44 : vector<8x1xf32>
    %cst_85 = arith.constant dense<0.000000e+00> : vector<8xf32>
    %176 = vector.multi_reduction <add>, %174, %cst_85 [1] : vector<8x8xf32> to vector<8xf32>
    %177 = vector.shape_cast %176 : vector<8xf32> to vector<8x1xf32>
    %178 = arith.addf %175, %177 : vector<8x1xf32>
    %179 = vector.broadcast %171 : vector<8x1xf32> to vector<8x8xf32>
    %180 = arith.mulf %179, %45 : vector<8x8xf32>
    %181 = arith.truncf %174 : vector<8x8xf32> to vector<8x8xbf16>
    %182 = vector.extract_strided_slice %47 {offsets = [0, 24], sizes = [8, 8], strides = [1, 1]} : vector<8x32xbf16> to vector<8x8xbf16>
    %cst_86 = arith.constant dense<0.000000e+00> : vector<8x8xf32>
    %183 = tpu.matmul %181, %182, %cst_86 {dimension_numbers = #tpu.dot_dimension_numbers<[1], [0], [0], [1], [0, 0, 1, 1], [], []>} : vector<8x8xbf16>, vector<8x8xbf16>, vector<8x8xf32> -> vector<8x8xf32>
    %184 = arith.addf %180, %183 : vector<8x8xf32>
    %185 = tpu.reciprocal %79 {approx = true} : vector<8x1xf32> -> vector<8x1xf32>
    %186 = vector.broadcast %185 : vector<8x1xf32> to vector<8x8xf32>
    %187 = arith.mulf %85, %186 : vector<8x8xf32>
    %c0_87 = arith.constant 0 : index
    %c0_88 = arith.constant 0 : index
    %188 = vector.load %arg24[%c0_87, %c0_88] : memref<16x32xf32, #tpu.memory_space<vmem>>, vector<8x8xf32>
    tpu.vector_store %arg24[%c0_87, %c0_88], %187 {strides = array<i32>} : memref<16x32xf32, #tpu.memory_space<vmem>>, vector<8x8xf32>,
    %189 = tpu.reciprocal %112 {approx = true} : vector<8x1xf32> -> vector<8x1xf32>
    %190 = vector.broadcast %189 : vector<8x1xf32> to vector<8x8xf32>
    %191 = arith.mulf %118, %190 : vector<8x8xf32>
    %c0_89 = arith.constant 0 : index
    %c8 = arith.constant 8 : index
    %192 = vector.load %arg24[%c0_89, %c8] : memref<16x32xf32, #tpu.memory_space<vmem>>, vector<8x8xf32>
    tpu.vector_store %arg24[%c0_89, %c8], %191 {strides = array<i32>} : memref<16x32xf32, #tpu.memory_space<vmem>>, vector<8x8xf32>,
    %193 = tpu.reciprocal %145 {approx = true} : vector<8x1xf32> -> vector<8x1xf32>
    %194 = vector.broadcast %193 : vector<8x1xf32> to vector<8x8xf32>
    %195 = arith.mulf %151, %194 : vector<8x8xf32>
    %c0_90 = arith.constant 0 : index
    %c16 = arith.constant 16 : index
    %196 = vector.load %arg24[%c0_90, %c16] : memref<16x32xf32, #tpu.memory_space<vmem>>, vector<8x8xf32>
    tpu.vector_store %arg24[%c0_90, %c16], %195 {strides = array<i32>} : memref<16x32xf32, #tpu.memory_space<vmem>>, vector<8x8xf32>,
    %197 = tpu.reciprocal %178 {approx = true} : vector<8x1xf32> -> vector<8x1xf32>
    %198 = vector.broadcast %197 : vector<8x1xf32> to vector<8x8xf32>
    %199 = arith.mulf %184, %198 : vector<8x8xf32>
    %c0_91 = arith.constant 0 : index
    %c24 = arith.constant 24 : index
    %200 = vector.load %arg24[%c0_91, %c24] : memref<16x32xf32, #tpu.memory_space<vmem>>, vector<8x8xf32>
    tpu.vector_store %arg24[%c0_91, %c24], %199 {strides = array<i32>} : memref<16x32xf32, #tpu.memory_space<vmem>>, vector<8x8xf32>,
    %c8_92 = arith.constant 8 : index
    %c0_93 = arith.constant 0 : index
    %201 = vector.load %arg21[%c8_92, %c0_93] : memref<16x32xbf16, #tpu.memory_space<vmem>>, vector<8x32xbf16>
    %cst_94 = arith.constant 0xFF800000 : f32
    %202 = vector.broadcast %cst_94 : f32 to vector<8x1xf32>
    %cst_95 = arith.constant 0.000000e+00 : f32
    %203 = vector.broadcast %cst_95 : f32 to vector<8x1xf32>
    %cst_96 = arith.constant 0.000000e+00 : f32
    %204 = vector.broadcast %cst_96 : f32 to vector<8x8xf32>
    %cst_97 = arith.constant 0xFF800000 : f32
    %205 = vector.broadcast %cst_97 : f32 to vector<8x1xf32>
    %cst_98 = arith.constant 0.000000e+00 : f32
    %206 = vector.broadcast %cst_98 : f32 to vector<8x1xf32>
    %cst_99 = arith.constant 0.000000e+00 : f32
    %207 = vector.broadcast %cst_99 : f32 to vector<8x8xf32>
    %cst_100 = arith.constant 0xFF800000 : f32
    %208 = vector.broadcast %cst_100 : f32 to vector<8x1xf32>
    %cst_101 = arith.constant 0.000000e+00 : f32
    %209 = vector.broadcast %cst_101 : f32 to vector<8x1xf32>
    %cst_102 = arith.constant 0.000000e+00 : f32
    %210 = vector.broadcast %cst_102 : f32 to vector<8x8xf32>
    %cst_103 = arith.constant 0xFF800000 : f32
    %211 = vector.broadcast %cst_103 : f32 to vector<8x1xf32>
    %cst_104 = arith.constant 0.000000e+00 : f32
    %212 = vector.broadcast %cst_104 : f32 to vector<8x1xf32>
    %cst_105 = arith.constant 0.000000e+00 : f32
    %213 = vector.broadcast %cst_105 : f32 to vector<8x8xf32>
    %c8_106 = arith.constant 8 : index
    %c0_107 = arith.constant 0 : index
    %214 = vector.load %arg22[%c8_106, %c0_107] : memref<16x32xbf16, #tpu.memory_space<vmem>>, vector<8x32xbf16>
    %c8_108 = arith.constant 8 : index
    %c0_109 = arith.constant 0 : index
    %215 = vector.load %arg23[%c8_108, %c0_109] : memref<16x32xbf16, #tpu.memory_space<vmem>>, vector<8x32xbf16>
    %216 = tpu.iota {dimensions = array<i32: 1>} : vector<8x8xi32>
    %c0_i32_110 = arith.constant 0 : i32
    %217 = vector.broadcast %c0_i32_110 : i32 to vector<8x8xi32>
    %218 = arith.addi %216, %217 : vector<8x8xi32>
    %219 = vector.broadcast %32 : vector<8x1xi32> to vector<8x8xi32>
    %220 = arith.cmpi sge, %219, %218 : vector<8x8xi32>
    %221 = vector.extract_strided_slice %201 {offsets = [0, 0], sizes = [8, 8], strides = [1, 1]} : vector<8x32xbf16> to vector<8x8xbf16>
    %222 = vector.extract_strided_slice %214 {offsets = [0, 0], sizes = [8, 8], strides = [1, 1]} : vector<8x32xbf16> to vector<8x8xbf16>
    %cst_111 = arith.constant dense<0.000000e+00> : vector<8x8xf32>
    %223 = tpu.matmul %221, %222, %cst_111 {dimension_numbers = #tpu.dot_dimension_numbers<[1], [1], [0], [0], [0, 0, 1, 0], [], []>} : vector<8x8xbf16>, vector<8x8xbf16>, vector<8x8xf32> -> vector<8x8xf32>
    %cst_112 = arith.constant 0.353553385 : f32
    %224 = vector.broadcast %cst_112 : f32 to vector<8x8xf32>
    %225 = arith.mulf %223, %224 : vector<8x8xf32>
    %cst_113 = arith.constant 0.000000e+00 : f32
    %226 = vector.broadcast %cst_113 : f32 to vector<8x8xf32>
    %227 = arith.select %220, %225, %226 : vector<8x8xi1>, vector<8x8xf32>
    %cst_114 = arith.constant 0.000000e+00 : f32
    %228 = vector.broadcast %cst_114 : f32 to vector<8x8xf32>
    %229 = arith.cmpf oeq, %227, %228 : vector<8x8xf32>
    %cst_115 = arith.constant 0xFF800000 : f32
    %230 = vector.broadcast %cst_115 : f32 to vector<8x8xf32>
    %231 = arith.select %229, %230, %227 : vector<8x8xi1>, vector<8x8xf32>
    %cst_116 = arith.constant dense<0xFF800000> : vector<8xf32>
    %232 = vector.multi_reduction <maximumf>, %231, %cst_116 [1] : vector<8x8xf32> to vector<8xf32>
    %233 = vector.shape_cast %232 : vector<8xf32> to vector<8x1xf32>
    %234 = arith.maximumf %202, %233 : vector<8x1xf32>
    %cst_117 = arith.constant 0xFF800000 : f32
    %235 = vector.broadcast %cst_117 : f32 to vector<8x1xf32>
    %236 = arith.cmpf oeq, %234, %235 : vector<8x1xf32>
    %cst_118 = arith.constant 0.000000e+00 : f32
    %237 = vector.broadcast %cst_118 : f32 to vector<8x1xf32>
    %238 = arith.select %236, %237, %234 : vector<8x1xi1>, vector<8x1xf32>
    %239 = arith.subf %202, %238 : vector<8x1xf32>
    %240 = math.exp %239 : vector<8x1xf32>
    %241 = vector.broadcast %238 : vector<8x1xf32> to vector<8x8xf32>
    %242 = arith.subf %231, %241 : vector<8x8xf32>
    %243 = math.exp %242 : vector<8x8xf32>
    %244 = arith.mulf %240, %203 : vector<8x1xf32>
    %cst_119 = arith.constant dense<0.000000e+00> : vector<8xf32>
    %245 = vector.multi_reduction <add>, %243, %cst_119 [1] : vector<8x8xf32> to vector<8xf32>
    %246 = vector.shape_cast %245 : vector<8xf32> to vector<8x1xf32>
    %247 = arith.addf %244, %246 : vector<8x1xf32>
    %248 = vector.broadcast %240 : vector<8x1xf32> to vector<8x8xf32>
    %249 = arith.mulf %248, %204 : vector<8x8xf32>
    %250 = arith.truncf %243 : vector<8x8xf32> to vector<8x8xbf16>
    %251 = vector.extract_strided_slice %215 {offsets = [0, 0], sizes = [8, 8], strides = [1, 1]} : vector<8x32xbf16> to vector<8x8xbf16>
    %cst_120 = arith.constant dense<0.000000e+00> : vector<8x8xf32>
    %252 = tpu.matmul %250, %251, %cst_120 {dimension_numbers = #tpu.dot_dimension_numbers<[1], [0], [0], [1], [0, 0, 1, 1], [], []>} : vector<8x8xbf16>, vector<8x8xbf16>, vector<8x8xf32> -> vector<8x8xf32>
    %253 = arith.addf %249, %252 : vector<8x8xf32>
    %254 = vector.extract_strided_slice %201 {offsets = [0, 8], sizes = [8, 8], strides = [1, 1]} : vector<8x32xbf16> to vector<8x8xbf16>
    %255 = vector.extract_strided_slice %214 {offsets = [0, 8], sizes = [8, 8], strides = [1, 1]} : vector<8x32xbf16> to vector<8x8xbf16>
    %cst_121 = arith.constant dense<0.000000e+00> : vector<8x8xf32>
    %256 = tpu.matmul %254, %255, %cst_121 {dimension_numbers = #tpu.dot_dimension_numbers<[1], [1], [0], [0], [0, 0, 1, 0], [], []>} : vector<8x8xbf16>, vector<8x8xbf16>, vector<8x8xf32> -> vector<8x8xf32>
    %cst_122 = arith.constant 0.353553385 : f32
    %257 = vector.broadcast %cst_122 : f32 to vector<8x8xf32>
    %258 = arith.mulf %256, %257 : vector<8x8xf32>
    %cst_123 = arith.constant 0.000000e+00 : f32
    %259 = vector.broadcast %cst_123 : f32 to vector<8x8xf32>
    %260 = arith.select %220, %258, %259 : vector<8x8xi1>, vector<8x8xf32>
    %cst_124 = arith.constant 0.000000e+00 : f32
    %261 = vector.broadcast %cst_124 : f32 to vector<8x8xf32>
    %262 = arith.cmpf oeq, %260, %261 : vector<8x8xf32>
    %cst_125 = arith.constant 0xFF800000 : f32
    %263 = vector.broadcast %cst_125 : f32 to vector<8x8xf32>
    %264 = arith.select %262, %263, %260 : vector<8x8xi1>, vector<8x8xf32>
    %cst_126 = arith.constant dense<0xFF800000> : vector<8xf32>
    %265 = vector.multi_reduction <maximumf>, %264, %cst_126 [1] : vector<8x8xf32> to vector<8xf32>
    %266 = vector.shape_cast %265 : vector<8xf32> to vector<8x1xf32>
    %267 = arith.maximumf %205, %266 : vector<8x1xf32>
    %cst_127 = arith.constant 0xFF800000 : f32
    %268 = vector.broadcast %cst_127 : f32 to vector<8x1xf32>
    %269 = arith.cmpf oeq, %267, %268 : vector<8x1xf32>
    %cst_128 = arith.constant 0.000000e+00 : f32
    %270 = vector.broadcast %cst_128 : f32 to vector<8x1xf32>
    %271 = arith.select %269, %270, %267 : vector<8x1xi1>, vector<8x1xf32>
    %272 = arith.subf %205, %271 : vector<8x1xf32>
    %273 = math.exp %272 : vector<8x1xf32>
    %274 = vector.broadcast %271 : vector<8x1xf32> to vector<8x8xf32>
    %275 = arith.subf %264, %274 : vector<8x8xf32>
    %276 = math.exp %275 : vector<8x8xf32>
    %277 = arith.mulf %273, %206 : vector<8x1xf32>
    %cst_129 = arith.constant dense<0.000000e+00> : vector<8xf32>
    %278 = vector.multi_reduction <add>, %276, %cst_129 [1] : vector<8x8xf32> to vector<8xf32>
    %279 = vector.shape_cast %278 : vector<8xf32> to vector<8x1xf32>
    %280 = arith.addf %277, %279 : vector<8x1xf32>
    %281 = vector.broadcast %273 : vector<8x1xf32> to vector<8x8xf32>
    %282 = arith.mulf %281, %207 : vector<8x8xf32>
    %283 = arith.truncf %276 : vector<8x8xf32> to vector<8x8xbf16>
    %284 = vector.extract_strided_slice %215 {offsets = [0, 8], sizes = [8, 8], strides = [1, 1]} : vector<8x32xbf16> to vector<8x8xbf16>
    %cst_130 = arith.constant dense<0.000000e+00> : vector<8x8xf32>
    %285 = tpu.matmul %283, %284, %cst_130 {dimension_numbers = #tpu.dot_dimension_numbers<[1], [0], [0], [1], [0, 0, 1, 1], [], []>} : vector<8x8xbf16>, vector<8x8xbf16>, vector<8x8xf32> -> vector<8x8xf32>
    %286 = arith.addf %282, %285 : vector<8x8xf32>
    %287 = vector.extract_strided_slice %201 {offsets = [0, 16], sizes = [8, 8], strides = [1, 1]} : vector<8x32xbf16> to vector<8x8xbf16>
    %288 = vector.extract_strided_slice %214 {offsets = [0, 16], sizes = [8, 8], strides = [1, 1]} : vector<8x32xbf16> to vector<8x8xbf16>
    %cst_131 = arith.constant dense<0.000000e+00> : vector<8x8xf32>
    %289 = tpu.matmul %287, %288, %cst_131 {dimension_numbers = #tpu.dot_dimension_numbers<[1], [1], [0], [0], [0, 0, 1, 0], [], []>} : vector<8x8xbf16>, vector<8x8xbf16>, vector<8x8xf32> -> vector<8x8xf32>
    %cst_132 = arith.constant 0.353553385 : f32
    %290 = vector.broadcast %cst_132 : f32 to vector<8x8xf32>
    %291 = arith.mulf %289, %290 : vector<8x8xf32>
    %cst_133 = arith.constant 0.000000e+00 : f32
    %292 = vector.broadcast %cst_133 : f32 to vector<8x8xf32>
    %293 = arith.select %220, %291, %292 : vector<8x8xi1>, vector<8x8xf32>
    %cst_134 = arith.constant 0.000000e+00 : f32
    %294 = vector.broadcast %cst_134 : f32 to vector<8x8xf32>
    %295 = arith.cmpf oeq, %293, %294 : vector<8x8xf32>
    %cst_135 = arith.constant 0xFF800000 : f32
    %296 = vector.broadcast %cst_135 : f32 to vector<8x8xf32>
    %297 = arith.select %295, %296, %293 : vector<8x8xi1>, vector<8x8xf32>
    %cst_136 = arith.constant dense<0xFF800000> : vector<8xf32>
    %298 = vector.multi_reduction <maximumf>, %297, %cst_136 [1] : vector<8x8xf32> to vector<8xf32>
    %299 = vector.shape_cast %298 : vector<8xf32> to vector<8x1xf32>
    %300 = arith.maximumf %208, %299 : vector<8x1xf32>
    %cst_137 = arith.constant 0xFF800000 : f32
    %301 = vector.broadcast %cst_137 : f32 to vector<8x1xf32>
    %302 = arith.cmpf oeq, %300, %301 : vector<8x1xf32>
    %cst_138 = arith.constant 0.000000e+00 : f32
    %303 = vector.broadcast %cst_138 : f32 to vector<8x1xf32>
    %304 = arith.select %302, %303, %300 : vector<8x1xi1>, vector<8x1xf32>
    %305 = arith.subf %208, %304 : vector<8x1xf32>
    %306 = math.exp %305 : vector<8x1xf32>
    %307 = vector.broadcast %304 : vector<8x1xf32> to vector<8x8xf32>
    %308 = arith.subf %297, %307 : vector<8x8xf32>
    %309 = math.exp %308 : vector<8x8xf32>
    %310 = arith.mulf %306, %209 : vector<8x1xf32>
    %cst_139 = arith.constant dense<0.000000e+00> : vector<8xf32>
    %311 = vector.multi_reduction <add>, %309, %cst_139 [1] : vector<8x8xf32> to vector<8xf32>
    %312 = vector.shape_cast %311 : vector<8xf32> to vector<8x1xf32>
    %313 = arith.addf %310, %312 : vector<8x1xf32>
    %314 = vector.broadcast %306 : vector<8x1xf32> to vector<8x8xf32>
    %315 = arith.mulf %314, %210 : vector<8x8xf32>
    %316 = arith.truncf %309 : vector<8x8xf32> to vector<8x8xbf16>
    %317 = vector.extract_strided_slice %215 {offsets = [0, 16], sizes = [8, 8], strides = [1, 1]} : vector<8x32xbf16> to vector<8x8xbf16>
    %cst_140 = arith.constant dense<0.000000e+00> : vector<8x8xf32>
    %318 = tpu.matmul %316, %317, %cst_140 {dimension_numbers = #tpu.dot_dimension_numbers<[1], [0], [0], [1], [0, 0, 1, 1], [], []>} : vector<8x8xbf16>, vector<8x8xbf16>, vector<8x8xf32> -> vector<8x8xf32>
    %319 = arith.addf %315, %318 : vector<8x8xf32>
    %320 = vector.extract_strided_slice %201 {offsets = [0, 24], sizes = [8, 8], strides = [1, 1]} : vector<8x32xbf16> to vector<8x8xbf16>
    %321 = vector.extract_strided_slice %214 {offsets = [0, 24], sizes = [8, 8], strides = [1, 1]} : vector<8x32xbf16> to vector<8x8xbf16>
    %cst_141 = arith.constant dense<0.000000e+00> : vector<8x8xf32>
    %322 = tpu.matmul %320, %321, %cst_141 {dimension_numbers = #tpu.dot_dimension_numbers<[1], [1], [0], [0], [0, 0, 1, 0], [], []>} : vector<8x8xbf16>, vector<8x8xbf16>, vector<8x8xf32> -> vector<8x8xf32>
    %cst_142 = arith.constant 0.353553385 : f32
    %323 = vector.broadcast %cst_142 : f32 to vector<8x8xf32>
    %324 = arith.mulf %322, %323 : vector<8x8xf32>
    %cst_143 = arith.constant 0.000000e+00 : f32
    %325 = vector.broadcast %cst_143 : f32 to vector<8x8xf32>
    %326 = arith.select %220, %324, %325 : vector<8x8xi1>, vector<8x8xf32>
    %cst_144 = arith.constant 0.000000e+00 : f32
    %327 = vector.broadcast %cst_144 : f32 to vector<8x8xf32>
    %328 = arith.cmpf oeq, %326, %327 : vector<8x8xf32>
    %cst_145 = arith.constant 0xFF800000 : f32
    %329 = vector.broadcast %cst_145 : f32 to vector<8x8xf32>
    %330 = arith.select %328, %329, %326 : vector<8x8xi1>, vector<8x8xf32>
    %cst_146 = arith.constant dense<0xFF800000> : vector<8xf32>
    %331 = vector.multi_reduction <maximumf>, %330, %cst_146 [1] : vector<8x8xf32> to vector<8xf32>
    %332 = vector.shape_cast %331 : vector<8xf32> to vector<8x1xf32>
    %333 = arith.maximumf %211, %332 : vector<8x1xf32>
    %cst_147 = arith.constant 0xFF800000 : f32
    %334 = vector.broadcast %cst_147 : f32 to vector<8x1xf32>
    %335 = arith.cmpf oeq, %333, %334 : vector<8x1xf32>
    %cst_148 = arith.constant 0.000000e+00 : f32
    %336 = vector.broadcast %cst_148 : f32 to vector<8x1xf32>
    %337 = arith.select %335, %336, %333 : vector<8x1xi1>, vector<8x1xf32>
    %338 = arith.subf %211, %337 : vector<8x1xf32>
    %339 = math.exp %338 : vector<8x1xf32>
    %340 = vector.broadcast %337 : vector<8x1xf32> to vector<8x8xf32>
    %341 = arith.subf %330, %340 : vector<8x8xf32>
    %342 = math.exp %341 : vector<8x8xf32>
    %343 = arith.mulf %339, %212 : vector<8x1xf32>
    %cst_149 = arith.constant dense<0.000000e+00> : vector<8xf32>
    %344 = vector.multi_reduction <add>, %342, %cst_149 [1] : vector<8x8xf32> to vector<8xf32>
    %345 = vector.shape_cast %344 : vector<8xf32> to vector<8x1xf32>
    %346 = arith.addf %343, %345 : vector<8x1xf32>
    %347 = vector.broadcast %339 : vector<8x1xf32> to vector<8x8xf32>
    %348 = arith.mulf %347, %213 : vector<8x8xf32>
    %349 = arith.truncf %342 : vector<8x8xf32> to vector<8x8xbf16>
    %350 = vector.extract_strided_slice %215 {offsets = [0, 24], sizes = [8, 8], strides = [1, 1]} : vector<8x32xbf16> to vector<8x8xbf16>
    %cst_150 = arith.constant dense<0.000000e+00> : vector<8x8xf32>
    %351 = tpu.matmul %349, %350, %cst_150 {dimension_numbers = #tpu.dot_dimension_numbers<[1], [0], [0], [1], [0, 0, 1, 1], [], []>} : vector<8x8xbf16>, vector<8x8xbf16>, vector<8x8xf32> -> vector<8x8xf32>
    %352 = arith.addf %348, %351 : vector<8x8xf32>
    %353 = tpu.reciprocal %247 {approx = true} : vector<8x1xf32> -> vector<8x1xf32>
    %354 = vector.broadcast %353 : vector<8x1xf32> to vector<8x8xf32>
    %355 = arith.mulf %253, %354 : vector<8x8xf32>
    %c8_151 = arith.constant 8 : index
    %c0_152 = arith.constant 0 : index
    %356 = vector.load %arg24[%c8_151, %c0_152] : memref<16x32xf32, #tpu.memory_space<vmem>>, vector<8x8xf32>
    tpu.vector_store %arg24[%c8_151, %c0_152], %355 {strides = array<i32>} : memref<16x32xf32, #tpu.memory_space<vmem>>, vector<8x8xf32>,
    %357 = tpu.reciprocal %280 {approx = true} : vector<8x1xf32> -> vector<8x1xf32>
    %358 = vector.broadcast %357 : vector<8x1xf32> to vector<8x8xf32>
    %359 = arith.mulf %286, %358 : vector<8x8xf32>
    %c8_153 = arith.constant 8 : index
    %c8_154 = arith.constant 8 : index
    %360 = vector.load %arg24[%c8_153, %c8_154] : memref<16x32xf32, #tpu.memory_space<vmem>>, vector<8x8xf32>
    tpu.vector_store %arg24[%c8_153, %c8_154], %359 {strides = array<i32>} : memref<16x32xf32, #tpu.memory_space<vmem>>, vector<8x8xf32>,
    %361 = tpu.reciprocal %313 {approx = true} : vector<8x1xf32> -> vector<8x1xf32>
    %362 = vector.broadcast %361 : vector<8x1xf32> to vector<8x8xf32>
    %363 = arith.mulf %319, %362 : vector<8x8xf32>
    %c8_155 = arith.constant 8 : index
    %c16_156 = arith.constant 16 : index
    %364 = vector.load %arg24[%c8_155, %c16_156] : memref<16x32xf32, #tpu.memory_space<vmem>>, vector<8x8xf32>
    tpu.vector_store %arg24[%c8_155, %c16_156], %363 {strides = array<i32>} : memref<16x32xf32, #tpu.memory_space<vmem>>, vector<8x8xf32>,
    %365 = tpu.reciprocal %346 {approx = true} : vector<8x1xf32> -> vector<8x1xf32>
    %366 = vector.broadcast %365 : vector<8x1xf32> to vector<8x8xf32>
    %367 = arith.mulf %352, %366 : vector<8x8xf32>
    %c8_157 = arith.constant 8 : index
    %c24_158 = arith.constant 24 : index
    %368 = vector.load %arg24[%c8_157, %c24_158] : memref<16x32xf32, #tpu.memory_space<vmem>>, vector<8x8xf32>
    tpu.vector_store %arg24[%c8_157, %c24_158], %367 {strides = array<i32>} : memref<16x32xf32, #tpu.memory_space<vmem>>, vector<8x8xf32>,
    %c0_159 = arith.constant 0 : index
    %c0_160 = arith.constant 0 : index
    %369 = vector.load %arg24[%c0_159, %c0_160] : memref<16x32xf32, #tpu.memory_space<vmem>>, vector<16x32xf32>
    %370 = arith.truncf %369 : vector<16x32xf32> to vector<16x32xbf16>
    %c0_161 = arith.constant 0 : index
    %c0_162 = arith.constant 0 : index
    %c0_163 = arith.constant 0 : index
    %371 = vector.load %arg9[%c0_161, %c0_162, %c0_163] : memref<1x32x32xbf16, #tpu.memory_space<vmem>>, vector<1x32x32xbf16>
    %372 = vector.shape_cast %371 : vector<1x32x32xbf16> to vector<32x32xbf16>
    %cst_164 = arith.constant dense<0.000000e+00> : vector<16x32xf32>
    %373 = tpu.matmul %370, %372, %cst_164 {dimension_numbers = #tpu.dot_dimension_numbers<[1], [0], [0], [1], [0, 0, 1, 1], [], []>} : vector<16x32xbf16>, vector<32x32xbf16>, vector<16x32xf32> -> vector<16x32xf32>
    %c0_165 = arith.constant 0 : index
    %c0_166 = arith.constant 0 : index
    %c0_167 = arith.constant 0 : index
    %374 = vector.load %arg10[%c0_165, %c0_166, %c0_167] : memref<1x1x32xf32, #tpu.memory_space<vmem>>, vector<1x1x32xf32>
    %375 = vector.shape_cast %374 : vector<1x1x32xf32> to vector<1x32xf32>
    %376 = vector.broadcast %375 : vector<1x32xf32> to vector<16x32xf32>
    %377 = arith.addf %373, %376 : vector<16x32xf32>
    %c0_168 = arith.constant 0 : index
    %c0_169 = arith.constant 0 : index
    %378 = vector.load %arg20[%c0_168, %c0_169] : memref<16x32xf32, #tpu.memory_space<vmem>>, vector<16x32xf32>
    %379 = arith.addf %378, %377 : vector<16x32xf32>
    %cst_170 = arith.constant dense<0.000000e+00> : vector<16xf32>
    %380 = vector.multi_reduction <add>, %379, %cst_170 [1] : vector<16x32xf32> to vector<16xf32>
    %381 = vector.shape_cast %380 : vector<16xf32> to vector<16x1xf32>
    %cst_171 = arith.constant 3.200000e+01 : f32
    %382 = vector.broadcast %cst_171 : f32 to vector<16x1xf32>
    %383 = arith.divf %381, %382 : vector<16x1xf32>
    %384 = vector.broadcast %383 : vector<16x1xf32> to vector<16x32xf32>
    %385 = arith.subf %379, %384 : vector<16x32xf32>
    %386 = arith.mulf %385, %385 : vector<16x32xf32>
    %cst_172 = arith.constant dense<0.000000e+00> : vector<16xf32>
    %387 = vector.multi_reduction <add>, %386, %cst_172 [1] : vector<16x32xf32> to vector<16xf32>
    %388 = vector.shape_cast %387 : vector<16xf32> to vector<16x1xf32>
    %cst_173 = arith.constant 3.200000e+01 : f32
    %389 = vector.broadcast %cst_173 : f32 to vector<16x1xf32>
    %390 = arith.divf %388, %389 : vector<16x1xf32>
    %391 = vector.broadcast %383 : vector<16x1xf32> to vector<16x32xf32>
    %392 = arith.subf %379, %391 : vector<16x32xf32>
    %cst_174 = arith.constant 9.99999974E-6 : f32
    %393 = vector.broadcast %cst_174 : f32 to vector<16x1xf32>
    %394 = arith.addf %390, %393 : vector<16x1xf32>
    %395 = math.rsqrt %394 : vector<16x1xf32>
    %396 = vector.broadcast %395 : vector<16x1xf32> to vector<16x32xf32>
    %397 = arith.mulf %392, %396 : vector<16x32xf32>
    %c0_175 = arith.constant 0 : index
    %c0_176 = arith.constant 0 : index
    %c0_177 = arith.constant 0 : index
    %398 = vector.load %arg11[%c0_175, %c0_176, %c0_177] : memref<1x1x32xf32, #tpu.memory_space<vmem>>, vector<1x1x32xf32>
    %399 = vector.shape_cast %398 : vector<1x1x32xf32> to vector<1x32xf32>
    %400 = vector.broadcast %399 : vector<1x32xf32> to vector<16x32xf32>
    %401 = arith.mulf %397, %400 : vector<16x32xf32>
    %c0_178 = arith.constant 0 : index
    %c0_179 = arith.constant 0 : index
    %c0_180 = arith.constant 0 : index
    %402 = vector.load %arg12[%c0_178, %c0_179, %c0_180] : memref<1x1x32xf32, #tpu.memory_space<vmem>>, vector<1x1x32xf32>
    %403 = vector.shape_cast %402 : vector<1x1x32xf32> to vector<1x32xf32>
    %404 = vector.broadcast %403 : vector<1x32xf32> to vector<16x32xf32>
    %405 = arith.addf %401, %404 : vector<16x32xf32>
    %c0_181 = arith.constant 0 : index
    %c0_182 = arith.constant 0 : index
    %406 = vector.load %arg20[%c0_181, %c0_182] : memref<16x32xf32, #tpu.memory_space<vmem>>, vector<16x32xf32>
    tpu.vector_store %arg20[%c0_181, %c0_182], %405 {strides = array<i32>} : memref<16x32xf32, #tpu.memory_space<vmem>>, vector<16x32xf32>,
    %407 = arith.truncf %405 : vector<16x32xf32> to vector<16x32xbf16>
    %cst_183 = arith.constant 0.000000e+00 : f32
    %408 = vector.broadcast %cst_183 : f32 to vector<16x32xf32>
    %c0_184 = arith.constant 0 : index
    %c0_185 = arith.constant 0 : index
    %c0_186 = arith.constant 0 : index
    %409 = vector.load %arg13[%c0_184, %c0_185, %c0_186] : memref<1x32x64xbf16, #tpu.memory_space<vmem>>, vector<1x32x64xbf16>
    %410 = vector.shape_cast %409 : vector<1x32x64xbf16> to vector<32x64xbf16>
    %cst_187 = arith.constant dense<0.000000e+00> : vector<16x64xf32>
    %411 = tpu.matmul %407, %410, %cst_187 {dimension_numbers = #tpu.dot_dimension_numbers<[1], [0], [0], [1], [0, 0, 1, 1], [], []>} : vector<16x32xbf16>, vector<32x64xbf16>, vector<16x64xf32> -> vector<16x64xf32>
    %c0_188 = arith.constant 0 : index
    %c0_189 = arith.constant 0 : index
    %c0_190 = arith.constant 0 : index
    %412 = vector.load %arg14[%c0_188, %c0_189, %c0_190] : memref<1x1x64xf32, #tpu.memory_space<vmem>>, vector<1x1x64xf32>
    %413 = vector.shape_cast %412 : vector<1x1x64xf32> to vector<1x64xf32>
    %414 = vector.broadcast %413 : vector<1x64xf32> to vector<16x64xf32>
    %415 = arith.addf %411, %414 : vector<16x64xf32>
    %cst_191 = arith.constant 0.000000e+00 : f32
    %416 = vector.broadcast %cst_191 : f32 to vector<16x64xf32>
    %417 = arith.maximumf %415, %416 : vector<16x64xf32>
    %418 = arith.truncf %417 : vector<16x64xf32> to vector<16x64xbf16>
    %c0_192 = arith.constant 0 : index
    %c0_193 = arith.constant 0 : index
    %c0_194 = arith.constant 0 : index
    %419 = vector.load %arg15[%c0_192, %c0_193, %c0_194] : memref<1x64x32xbf16, #tpu.memory_space<vmem>>, vector<1x64x32xbf16>
    %420 = vector.shape_cast %419 : vector<1x64x32xbf16> to vector<64x32xbf16>
    %cst_195 = arith.constant dense<0.000000e+00> : vector<16x32xf32>
    %421 = tpu.matmul %418, %420, %cst_195 {dimension_numbers = #tpu.dot_dimension_numbers<[1], [0], [0], [1], [0, 0, 1, 1], [], []>} : vector<16x64xbf16>, vector<64x32xbf16>, vector<16x32xf32> -> vector<16x32xf32>
    %422 = arith.addf %408, %421 : vector<16x32xf32>
    %c0_196 = arith.constant 0 : index
    %c0_197 = arith.constant 0 : index
    %c0_198 = arith.constant 0 : index
    %423 = vector.load %arg16[%c0_196, %c0_197, %c0_198] : memref<1x1x32xf32, #tpu.memory_space<vmem>>, vector<1x1x32xf32>
    %424 = vector.shape_cast %423 : vector<1x1x32xf32> to vector<1x32xf32>
    %425 = vector.broadcast %424 : vector<1x32xf32> to vector<16x32xf32>
    %426 = arith.addf %422, %425 : vector<16x32xf32>
    %c0_199 = arith.constant 0 : index
    %c0_200 = arith.constant 0 : index
    %427 = vector.load %arg20[%c0_199, %c0_200] : memref<16x32xf32, #tpu.memory_space<vmem>>, vector<16x32xf32>
    %428 = arith.addf %427, %426 : vector<16x32xf32>
    %cst_201 = arith.constant dense<0.000000e+00> : vector<16xf32>
    %429 = vector.multi_reduction <add>, %428, %cst_201 [1] : vector<16x32xf32> to vector<16xf32>
    %430 = vector.shape_cast %429 : vector<16xf32> to vector<16x1xf32>
    %cst_202 = arith.constant 3.200000e+01 : f32
    %431 = vector.broadcast %cst_202 : f32 to vector<16x1xf32>
    %432 = arith.divf %430, %431 : vector<16x1xf32>
    %433 = vector.broadcast %432 : vector<16x1xf32> to vector<16x32xf32>
    %434 = arith.subf %428, %433 : vector<16x32xf32>
    %435 = arith.mulf %434, %434 : vector<16x32xf32>
    %cst_203 = arith.constant dense<0.000000e+00> : vector<16xf32>
    %436 = vector.multi_reduction <add>, %435, %cst_203 [1] : vector<16x32xf32> to vector<16xf32>
    %437 = vector.shape_cast %436 : vector<16xf32> to vector<16x1xf32>
    %cst_204 = arith.constant 3.200000e+01 : f32
    %438 = vector.broadcast %cst_204 : f32 to vector<16x1xf32>
    %439 = arith.divf %437, %438 : vector<16x1xf32>
    %440 = vector.broadcast %432 : vector<16x1xf32> to vector<16x32xf32>
    %441 = arith.subf %428, %440 : vector<16x32xf32>
    %cst_205 = arith.constant 9.99999974E-6 : f32
    %442 = vector.broadcast %cst_205 : f32 to vector<16x1xf32>
    %443 = arith.addf %439, %442 : vector<16x1xf32>
    %444 = math.rsqrt %443 : vector<16x1xf32>
    %445 = vector.broadcast %444 : vector<16x1xf32> to vector<16x32xf32>
    %446 = arith.mulf %441, %445 : vector<16x32xf32>
    %c0_206 = arith.constant 0 : index
    %c0_207 = arith.constant 0 : index
    %c0_208 = arith.constant 0 : index
    %447 = vector.load %arg17[%c0_206, %c0_207, %c0_208] : memref<1x1x32xf32, #tpu.memory_space<vmem>>, vector<1x1x32xf32>
    %448 = vector.shape_cast %447 : vector<1x1x32xf32> to vector<1x32xf32>
    %449 = vector.broadcast %448 : vector<1x32xf32> to vector<16x32xf32>
    %450 = arith.mulf %446, %449 : vector<16x32xf32>
    %c0_209 = arith.constant 0 : index
    %c0_210 = arith.constant 0 : index
    %c0_211 = arith.constant 0 : index
    %451 = vector.load %arg18[%c0_209, %c0_210, %c0_211] : memref<1x1x32xf32, #tpu.memory_space<vmem>>, vector<1x1x32xf32>
    %452 = vector.shape_cast %451 : vector<1x1x32xf32> to vector<1x32xf32>
    %453 = vector.broadcast %452 : vector<1x32xf32> to vector<16x32xf32>
    %454 = arith.addf %450, %453 : vector<16x32xf32>
    %c0_212 = arith.constant 0 : index
    %c0_213 = arith.constant 0 : index
    %455 = vector.load %arg20[%c0_212, %c0_213] : memref<16x32xf32, #tpu.memory_space<vmem>>, vector<16x32xf32>
    tpu.vector_store %arg20[%c0_212, %c0_213], %454 {strides = array<i32>} : memref<16x32xf32, #tpu.memory_space<vmem>>, vector<16x32xf32>,
    %c1_i32 = arith.constant 1 : i32
    %456 = arith.cmpi eq, %arg1, %c1_i32 : i32
    %457 = arith.extui %456 : i1 to i32
    %c0_i32_214 = arith.constant 0 : i32
    %458 = arith.cmpi ne, %457, %c0_i32_214 : i32
    scf.if %458 {
      %c0_215 = arith.constant 0 : index
      %c0_216 = arith.constant 0 : index
      %459 = vector.load %arg19[%c0_215, %c0_216] : memref<16x32xf32, #tpu.memory_space<vmem>>, vector<16x32xf32>
      tpu.vector_store %arg19[%c0_215, %c0_216], %454 {strides = array<i32>} : memref<16x32xf32, #tpu.memory_space<vmem>>, vector<16x32xf32>,
    } else {
    }
    return
  }
  func.func @transform_0(%arg0: i32, %arg1: i32) -> (i32, i32) {
    %c0_i32 = arith.constant 0 : i32
    %c0_i32_0 = arith.constant 0 : i32
    return %arg0, %c0_i32 : i32, i32
  }
  func.func @transform_1(%arg0: i32, %arg1: i32) -> (i32, i32, i32) {
    %c0_i32 = arith.constant 0 : i32
    %c0_i32_0 = arith.constant 0 : i32
    %c0_i32_1 = arith.constant 0 : i32
    return %arg1, %c0_i32, %c0_i32_0 : i32, i32, i32
  }
  func.func @transform_2(%arg0: i32, %arg1: i32) -> (i32, i32, i32) {
    %c0_i32 = arith.constant 0 : i32
    %c0_i32_0 = arith.constant 0 : i32
    %c0_i32_1 = arith.constant 0 : i32
    return %arg1, %c0_i32, %c0_i32_0 : i32, i32, i32
  }
  func.func @transform_3(%arg0: i32, %arg1: i32) -> (i32, i32, i32) {
    %c0_i32 = arith.constant 0 : i32
    %c0_i32_0 = arith.constant 0 : i32
    %c0_i32_1 = arith.constant 0 : i32
    return %arg1, %c0_i32, %c0_i32_0 : i32, i32, i32
  }
  func.func @transform_4(%arg0: i32, %arg1: i32) -> (i32, i32, i32) {
    %c0_i32 = arith.constant 0 : i32
    %c0_i32_0 = arith.constant 0 : i32
    %c0_i32_1 = arith.constant 0 : i32
    return %arg1, %c0_i32, %c0_i32_0 : i32, i32, i32
  }
  func.func @transform_5(%arg0: i32, %arg1: i32) -> (i32, i32, i32) {
    %c0_i32 = arith.constant 0 : i32
    %c0_i32_0 = arith.constant 0 : i32
    %c0_i32_1 = arith.constant 0 : i32
    return %arg1, %c0_i32, %c0_i32_0 : i32, i32, i32
  }
  func.func @transform_6(%arg0: i32, %arg1: i32) -> (i32, i32, i32) {
    %c0_i32 = arith.constant 0 : i32
    %c0_i32_0 = arith.constant 0 : i32
    %c0_i32_1 = arith.constant 0 : i32
    return %arg1, %c0_i32, %c0_i32_0 : i32, i32, i32
  }
  func.func @transform_7(%arg0: i32, %arg1: i32) -> (i32, i32, i32) {
    %c0_i32 = arith.constant 0 : i32
    %c0_i32_0 = arith.constant 0 : i32
    %c0_i32_1 = arith.constant 0 : i32
    return %arg1, %c0_i32, %c0_i32_0 : i32, i32, i32
  }
  func.func @transform_8(%arg0: i32, %arg1: i32) -> (i32, i32, i32) {
    %c0_i32 = arith.constant 0 : i32
    %c0_i32_0 = arith.constant 0 : i32
    %c0_i32_1 = arith.constant 0 : i32
    return %arg1, %c0_i32, %c0_i32_0 : i32, i32, i32
  }
  func.func @transform_9(%arg0: i32, %arg1: i32) -> (i32, i32, i32) {
    %c0_i32 = arith.constant 0 : i32
    %c0_i32_0 = arith.constant 0 : i32
    %c0_i32_1 = arith.constant 0 : i32
    return %arg1, %c0_i32, %c0_i32_0 : i32, i32, i32
  }
  func.func @transform_10(%arg0: i32, %arg1: i32) -> (i32, i32, i32) {
    %c0_i32 = arith.constant 0 : i32
    %c0_i32_0 = arith.constant 0 : i32
    %c0_i32_1 = arith.constant 0 : i32
    return %arg1, %c0_i32, %c0_i32_0 : i32, i32, i32
  }
  func.func @transform_11(%arg0: i32, %arg1: i32) -> (i32, i32, i32) {
    %c0_i32 = arith.constant 0 : i32
    %c0_i32_0 = arith.constant 0 : i32
    %c0_i32_1 = arith.constant 0 : i32
    return %arg1, %c0_i32, %c0_i32_0 : i32, i32, i32
  }
  func.func @transform_12(%arg0: i32, %arg1: i32) -> (i32, i32, i32) {
    %c0_i32 = arith.constant 0 : i32
    %c0_i32_0 = arith.constant 0 : i32
    %c0_i32_1 = arith.constant 0 : i32
    return %arg1, %c0_i32, %c0_i32_0 : i32, i32, i32
  }
  func.func @transform_13(%arg0: i32, %arg1: i32) -> (i32, i32, i32) {
    %c0_i32 = arith.constant 0 : i32
    %c0_i32_0 = arith.constant 0 : i32
    %c0_i32_1 = arith.constant 0 : i32
    return %arg1, %c0_i32, %c0_i32_0 : i32, i32, i32
  }
  func.func @transform_14(%arg0: i32, %arg1: i32) -> (i32, i32, i32) {
    %c0_i32 = arith.constant 0 : i32
    %c0_i32_0 = arith.constant 0 : i32
    %c0_i32_1 = arith.constant 0 : i32
    return %arg1, %c0_i32, %c0_i32_0 : i32, i32, i32
  }
  func.func @transform_15(%arg0: i32, %arg1: i32) -> (i32, i32, i32) {
    %c0_i32 = arith.constant 0 : i32
    %c0_i32_0 = arith.constant 0 : i32
    %c0_i32_1 = arith.constant 0 : i32
    return %arg1, %c0_i32, %c0_i32_0 : i32, i32, i32
  }
  func.func @transform_16(%arg0: i32, %arg1: i32) -> (i32, i32, i32) {
    %c0_i32 = arith.constant 0 : i32
    %c0_i32_0 = arith.constant 0 : i32
    %c0_i32_1 = arith.constant 0 : i32
    return %arg1, %c0_i32, %c0_i32_0 : i32, i32, i32
  }
  func.func @transform_17(%arg0: i32, %arg1: i32) -> (i32, i32) {
    %c0_i32 = arith.constant 0 : i32
    %c0_i32_0 = arith.constant 0 : i32
    return %arg0, %c0_i32 : i32, i32
  }
}

</mosaic_0001>

<llo_original>
// kernel: tpu_custom_call.1
$region0: #{tpu_custom_call.1}
  #allocation0 [shape = 'u32[]', space=smem, size = 0x4, offset = 0x4, fixed_abs, tag = 'smem constant byte address 0x4 - core index']
  #allocation1 [shape = 'u32[72,128]{1,0:T(1,128)}', space=vmem, size = 0x9000, scoped, tag = 'internal scratch']
  #allocation2 [shape = 'f32[16,32]{1,0:T(8,128)}', space=vmem, size = 0x2000, scoped, tag = 'scratch operand']
  #allocation3 [shape = 'bf16[16,32]{1,0:T(8,128)(2,1)}', space=vmem, size = 0x1000, scoped, tag = 'scratch operand']
  #allocation4 [shape = 'bf16[16,32]{1,0:T(8,128)(2,1)}', space=vmem, size = 0x1000, scoped, tag = 'scratch operand']
  #allocation5 [shape = 'bf16[16,32]{1,0:T(8,128)(2,1)}', space=vmem, size = 0x1000, scoped, tag = 'scratch operand']
  #allocation6 [shape = 'f32[16,32]{1,0:T(8,128)}', space=vmem, size = 0x2000, scoped, tag = 'scratch operand']
  %s0 = inlined_call_operand.hbm [shape: f32[16,32], index: 0, kind: input, shape index: {}]
  %s1 = inlined_call_operand.vmem [shape: bf16[2,32,32], index: 1, kind: input, shape index: {}]
  %s2 = inlined_call_operand.hbm [shape: f32[2,1,32], index: 2, kind: input, shape index: {}]
  %s3 = inlined_call_operand.vmem [shape: bf16[2,32,32], index: 3, kind: input, shape index: {}]
  %s4 = inlined_call_operand.vmem [shape: f32[2,1,32], index: 4, kind: input, shape index: {}]
  %s5 = inlined_call_operand.vmem [shape: bf16[2,32,32], index: 5, kind: input, shape index: {}]
  %s6 = inlined_call_operand.vmem [shape: f32[2,1,32], index: 6, kind: input, shape index: {}]
  %s7 = inlined_call_operand.hbm [shape: bf16[2,32,32], index: 7, kind: input, shape index: {}]
  %s8 = inlined_call_operand.vmem [shape: f32[2,1,32], index: 8, kind: input, shape index: {}]
  %s9 = inlined_call_operand.hbm [shape: f32[2,1,32], index: 9, kind: input, shape index: {}]
  %s10 = inlined_call_operand.vmem [shape: f32[2,1,32], index: 10, kind: input, shape index: {}]
  %s11 = inlined_call_operand.hbm [shape: bf16[2,32,64], index: 11, kind: input, shape index: {}]
  %s12 = inlined_call_operand.vmem [shape: f32[2,1,64], index: 12, kind: input, shape index: {}]
  %s13 = inlined_call_operand.vmem [shape: bf16[2,64,32], index: 13, kind: input, shape index: {}]
  %s14 = inlined_call_operand.vmem [shape: f32[2,1,32], index: 14, kind: input, shape index: {}]
  %s15 = inlined_call_operand.hbm [shape: f32[2,1,32], index: 15, kind: input, shape index: {}]
  %s16 = inlined_call_operand.vmem [shape: f32[2,1,32], index: 16, kind: input, shape index: {}]
  %s17 = inlined_call_operand.hbm [shape: f32[16,32], index: 17, kind: output, shape index: {}]
  %s18 = sld [smem:[#allocation0]]
  $region133: #{tpu_custom_call.1} parent=0
    _
  %s20 = ssub.s32 1, %s18
  %s21 = scalar_select 0, %s20, %s18
  $region1: #{tpu_custom_call.1} parent=0
    #allocation7 [shape = 'u8[8192]{0}', space=vmem, size = 0x2000, scoped, tag = 'input window, operand 0, single buffered']
    #allocation8 [shape = 's32[2]{0}', space=sflag, size = 0x8, scoped, tag = 'scoped memory for tpu_custom_call.1']
    #allocation9 [shape = 's32[2]{0}', space=sflag, size = 0x8, scoped, tag = 'scoped memory for tpu_custom_call.1']
    #allocation10 [shape = 'u8[1024]{0}', space=vmem, size = 0x400, scoped, tag = 'input window, operand 2']
    #allocation11 [shape = 's32[2]{0}', space=sflag, size = 0x8, scoped, tag = 'scoped memory for tpu_custom_call.1']
    #allocation12 [shape = 'u8[16384]{0}', space=vmem, size = 0x4000, scoped, tag = 'input window, operand 7']
    #allocation13 [shape = 'u8[1024]{0}', space=vmem, size = 0x400, scoped, tag = 'input window, operand 9']
    #allocation14 [shape = 's32[2]{0}', space=sflag, size = 0x8, scoped, tag = 'scoped memory for tpu_custom_call.1']
    #allocation15 [shape = 'u8[16384]{0}', space=vmem, size = 0x4000, scoped, tag = 'input window, operand 11']
    #allocation16 [shape = 'u8[1024]{0}', space=vmem, size = 0x400, scoped, tag = 'input window, operand 15']
    #allocation17 [shape = 's32[2]{0}', space=sflag, size = 0x8, scoped, tag = 'scoped memory for tpu_custom_call.1']
    #allocation18 [shape = 'u8[8192]{0}', space=vmem, size = 0x2000, scoped, tag = 'output window, operand 0, single buffered']
    %22 = vsyncpa [#allocation8], 0
    %23 = vsyncpa [#allocation11], 0
    %s24 = scalar_lea.sflag [#allocation11], 1
    %25 = vsyncpa %s24, 0
    %26 = vsyncpa [#allocation14], 0
    %s27 = scalar_lea.sflag [#allocation14], 1
    %28 = vsyncpa %s27, 0
    %29 = vsyncpa [#allocation17], 0
    %s30 = scalar_lea.sflag [#allocation17], 1
    %31 = vsyncpa %s30, 0
    %32 = vsyncpa [#allocation9], 0
    loop: start=0, step=1, limit=4
    $region2: #{tpu_custom_call.1} parent=1 // loop_pre_header
      _
    $region3: #{tpu_custom_call.1} parent=1 // loop_header
      %s34 = sphi 0, %s38
      %p35 = scmp.ge.s32.totalorder %s34, 4
      %s41 = sphi 0, %s53
      %s42 = sphi 0, %s49
      %s43 = sphi 0, %s41
      %s44 = sphi 0, %s42
      %s45 = sphi 0, %s43
      %s46 = sphi 0, %s44
      %s56 = sphi 0, %s58
      %s59 = sphi 0, %s56
      %s60 = sphi 0, %s59
      %s76 = sphi 0, %s60
      %s82 = sphi 0, %s84
      %s85 = sphi 0, %s82
      %s86 = sphi 0, %s85
      %s102 = sphi 0, %s86
      %s108 = sphi 0, %s110
      %s111 = sphi 0, %s108
      %s112 = sphi 0, %s111
      %s128 = sphi 0, %s112
      %s134 = sphi 0, %s136
      %s137 = sphi 0, %s134
      %s138 = sphi 0, %s137
      %s154 = sphi 0, %s138
      %s160 = sphi 0, %s162
      %s163 = sphi 0, %s160
      %s164 = sphi 0, %s163
      %s180 = sphi 0, %s164
      %s186 = sphi 0, %s188
      %s189 = sphi 0, %s186
      %s190 = sphi 0, %s189
      %s206 = sphi 0, %s190
      %s212 = sphi 0, %s214
      %s215 = sphi 0, %s212
      %s216 = sphi 0, %s215
      %s232 = sphi 0, %s216
      %s238 = sphi 0, %s240
      %s241 = sphi 0, %s238
      %s242 = sphi 0, %s241
      %s258 = sphi 0, %s242
      %s264 = sphi 0, %s266
      %s267 = sphi 0, %s264
      %s268 = sphi 0, %s267
      %s284 = sphi 0, %s268
      %s290 = sphi 0, %s292
      %s293 = sphi 0, %s290
      %s294 = sphi 0, %s293
      %s310 = sphi 0, %s294
      %s316 = sphi 0, %s318
      %s319 = sphi 0, %s316
      %s320 = sphi 0, %s319
      %s336 = sphi 0, %s320
      %s342 = sphi 0, %s344
      %s345 = sphi 0, %s342
      %s346 = sphi 0, %s345
      %s362 = sphi 0, %s346
      %s368 = sphi 0, %s370
      %s371 = sphi 0, %s368
      %s372 = sphi 0, %s371
      %s388 = sphi 0, %s372
      %s394 = sphi 0, %s396
      %s397 = sphi 0, %s394
      %s398 = sphi 0, %s397
      %s414 = sphi 0, %s398
      %s420 = sphi 0, %s422
      %s423 = sphi 0, %s420
      %s424 = sphi 0, %s423
      %s440 = sphi 0, %s424
      %s446 = sphi 0, %s448
      %s449 = sphi 0, %s446
      %s450 = sphi 0, %s449
      %s466 = sphi 0, %s450
      %s472 = sphi 0, %s474
      %s475 = sphi 0, %s472
      %s476 = sphi 0, %s475
      %s492 = sphi 0, %s476
      %s498 = sphi 0, %s500
      %s501 = sphi 0, %s498
      %s502 = sphi 0, %s501
      %s518 = sphi 0, %s502
    $region4: #{tpu_custom_call.1} parent=1 // loop_header_branch
      %37 = sbr.rel (%p35) target = $region8
    $region5: #{tpu_custom_call.1} parent=1 // loop_body
      %s39 = ssub.s32 %s34, 1
      %s40 = ssub.s32 %s34, 2
      %s47 = sadd.s32 1, %s42
      %p48 = scmp.ge.s32.totalorder %s47, 2
      %s49 = scalar_select %p48, 0, %s47
      %s50 = sadd.s32 1, %s41
      %s51 = scalar_select %p48, %s50, %s41
      %p52 = scmp.ge.s32.totalorder %s51, 1
      %s53 = scalar_select %p52, 0, %s51
      %s54 = ssub.s32 %s41, %s53
      %p55 = scmp.eq.s32.totalorder %s54, 0
      %s57 = sadd.s32 %s56, 1
      %s58 = scalar_select %p55, %s56, %s57
      %p61 = pneg %p55
      %p62 = scmp.eq.s32.totalorder %s34, 1
      %p63 = por %p61, %p62
      %p64 = scmp.ne.s32.totalorder %s56, %s59
      %p65 = scmp.eq.s32.totalorder %s34, 0
      %p66 = por %p64, %p65
      %p67 = scmp.ne.s32.totalorder %s56, %s59
      %p68 = scmp.eq.s32.totalorder %s39, 1
      %p69 = por %p67, %p68
      %p70 = scmp.ne.s32.totalorder %s59, %s60
      %p71 = scmp.eq.s32.totalorder %s39, 0
      %p72 = por %p70, %p71
      %p73 = scmp.ne.s32.totalorder %s59, %s60
      %p74 = scmp.eq.s32.totalorder %s40, 1
      %p75 = por %p73, %p74
      %p77 = scmp.ne.s32.totalorder %s60, %s76
      %p78 = scmp.eq.s32.totalorder %s40, 0
      %p79 = por %p77, %p78
      %s80 = ssub.s32 %s42, %s49
      %p81 = scmp.eq.s32.totalorder %s80, 0
      %s83 = sadd.s32 %s82, 1
      %s84 = scalar_select %p81, %s82, %s83
      %p87 = pneg %p81
      %p88 = scmp.eq.s32.totalorder %s34, 1
      %p89 = por %p87, %p88
      %p90 = scmp.ne.s32.totalorder %s82, %s85
      %p91 = scmp.eq.s32.totalorder %s34, 0
      %p92 = por %p90, %p91
      %p93 = scmp.ne.s32.totalorder %s82, %s85
      %p94 = scmp.eq.s32.totalorder %s39, 1
      %p95 = por %p93, %p94
      %p96 = scmp.ne.s32.totalorder %s85, %s86
      %p97 = scmp.eq.s32.totalorder %s39, 0
      %p98 = por %p96, %p97
      %p99 = scmp.ne.s32.totalorder %s85, %s86
      %p100 = scmp.eq.s32.totalorder %s40, 1
      %p101 = por %p99, %p100
      %p103 = scmp.ne.s32.totalorder %s86, %s102
      %p104 = scmp.eq.s32.totalorder %s40, 0
      %p105 = por %p103, %p104
      %s106 = ssub.s32 %s42, %s49
      %p107 = scmp.eq.s32.totalorder %s106, 0
      %s109 = sadd.s32 %s108, 1
      %s110 = scalar_select %p107, %s108, %s109
      %p113 = pneg %p107
      %p114 = scmp.eq.s32.totalorder %s34, 1
      %p115 = por %p113, %p114
      %p116 = scmp.ne.s32.totalorder %s108, %s111
      %p117 = scmp.eq.s32.totalorder %s34, 0
      %p118 = por %p116, %p117
      %p119 = scmp.ne.s32.totalorder %s108, %s111
      %p120 = scmp.eq.s32.totalorder %s39, 1
      %p121 = por %p119, %p120
      %p122 = scmp.ne.s32.totalorder %s111, %s112
      %p123 = scmp.eq.s32.totalorder %s39, 0
      %p124 = por %p122, %p123
      %p125 = scmp.ne.s32.totalorder %s111, %s112
      %p126 = scmp.eq.s32.totalorder %s40, 1
      %p127 = por %p125, %p126
      %p129 = scmp.ne.s32.totalorder %s112, %s128
      %p130 = scmp.eq.s32.totalorder %s40, 0
      %p131 = por %p129, %p130
      %s132 = ssub.s32 %s42, %s49
      %p133 = scmp.eq.s32.totalorder %s132, 0
      %s135 = sadd.s32 %s134, 1
      %s136 = scalar_select %p133, %s134, %s135
      %p139 = pneg %p133
      %p140 = scmp.eq.s32.totalorder %s34, 1
      %p141 = por %p139, %p140
      %p142 = scmp.ne.s32.totalorder %s134, %s137
      %p143 = scmp.eq.s32.totalorder %s34, 0
      %p144 = por %p142, %p143
      %p145 = scmp.ne.s32.totalorder %s134, %s137
      %p146 = scmp.eq.s32.totalorder %s39, 1
      %p147 = por %p145, %p146
      %p148 = scmp.ne.s32.totalorder %s137, %s138
      %p149 = scmp.eq.s32.totalorder %s39, 0
      %p150 = por %p148, %p149
      %p151 = scmp.ne.s32.totalorder %s137, %s138
      %p152 = scmp.eq.s32.totalorder %s40, 1
      %p153 = por %p151, %p152
      %p155 = scmp.ne.s32.totalorder %s138, %s154
      %p156 = scmp.eq.s32.totalorder %s40, 0
      %p157 = por %p155, %p156
      %s158 = ssub.s32 %s42, %s49
      %p159 = scmp.eq.s32.totalorder %s158, 0
      %s161 = sadd.s32 %s160, 1
      %s162 = scalar_select %p159, %s160, %s161
      %p165 = pneg %p159
      %p166 = scmp.eq.s32.totalorder %s34, 1
      %p167 = por %p165, %p166
      %p168 = scmp.ne.s32.totalorder %s160, %s163
      %p169 = scmp.eq.s32.totalorder %s34, 0
      %p170 = por %p168, %p169
      %p171 = scmp.ne.s32.totalorder %s160, %s163
      %p172 = scmp.eq.s32.totalorder %s39, 1
      %p173 = por %p171, %p172
      %p174 = scmp.ne.s32.totalorder %s163, %s164
      %p175 = scmp.eq.s32.totalorder %s39, 0
      %p176 = por %p174, %p175
      %p177 = scmp.ne.s32.totalorder %s163, %s164
      %p178 = scmp.eq.s32.totalorder %s40, 1
      %p179 = por %p177, %p178
      %p181 = scmp.ne.s32.totalorder %s164, %s180
      %p182 = scmp.eq.s32.totalorder %s40, 0
      %p183 = por %p181, %p182
      %s184 = ssub.s32 %s42, %s49
      %p185 = scmp.eq.s32.totalorder %s184, 0
      %s187 = sadd.s32 %s186, 1
      %s188 = scalar_select %p185, %s186, %s187
      %p191 = pneg %p185
      %p192 = scmp.eq.s32.totalorder %s34, 1
      %p193 = por %p191, %p192
      %p194 = scmp.ne.s32.totalorder %s186, %s189
      %p195 = scmp.eq.s32.totalorder %s34, 0
      %p196 = por %p194, %p195
      %p197 = scmp.ne.s32.totalorder %s186, %s189
      %p198 = scmp.eq.s32.totalorder %s39, 1
      %p199 = por %p197, %p198
      %p200 = scmp.ne.s32.totalorder %s189, %s190
      %p201 = scmp.eq.s32.totalorder %s39, 0
      %p202 = por %p200, %p201
      %p203 = scmp.ne.s32.totalorder %s189, %s190
      %p204 = scmp.eq.s32.totalorder %s40, 1
      %p205 = por %p203, %p204
      %p207 = scmp.ne.s32.totalorder %s190, %s206
      %p208 = scmp.eq.s32.totalorder %s40, 0
      %p209 = por %p207, %p208
      %s210 = ssub.s32 %s42, %s49
      %p211 = scmp.eq.s32.totalorder %s210, 0
      %s213 = sadd.s32 %s212, 1
      %s214 = scalar_select %p211, %s212, %s213
      %p217 = pneg %p211
      %p218 = scmp.eq.s32.totalorder %s34, 1
      %p219 = por %p217, %p218
      %p220 = scmp.ne.s32.totalorder %s212, %s215
      %p221 = scmp.eq.s32.totalorder %s34, 0
      %p222 = por %p220, %p221
      %p223 = scmp.ne.s32.totalorder %s212, %s215
      %p224 = scmp.eq.s32.totalorder %s39, 1
      %p225 = por %p223, %p224
      %p226 = scmp.ne.s32.totalorder %s215, %s216
      %p227 = scmp.eq.s32.totalorder %s39, 0
      %p228 = por %p226, %p227
      %p229 = scmp.ne.s32.totalorder %s215, %s216
      %p230 = scmp.eq.s32.totalorder %s40, 1
      %p231 = por %p229, %p230
      %p233 = scmp.ne.s32.totalorder %s216, %s232
      %p234 = scmp.eq.s32.totalorder %s40, 0
      %p235 = por %p233, %p234
      %s236 = ssub.s32 %s42, %s49
      %p237 = scmp.eq.s32.totalorder %s236, 0
      %s239 = sadd.s32 %s238, 1
      %s240 = scalar_select %p237, %s238, %s239
      %p243 = pneg %p237
      %p244 = scmp.eq.s32.totalorder %s34, 1
      %p245 = por %p243, %p244
      %p246 = scmp.ne.s32.totalorder %s238, %s241
      %p247 = scmp.eq.s32.totalorder %s34, 0
      %p248 = por %p246, %p247
      %p249 = scmp.ne.s32.totalorder %s238, %s241
      %p250 = scmp.eq.s32.totalorder %s39, 1
      %p251 = por %p249, %p250
      %p252 = scmp.ne.s32.totalorder %s241, %s242
      %p253 = scmp.eq.s32.totalorder %s39, 0
      %p254 = por %p252, %p253
      %p255 = scmp.ne.s32.totalorder %s241, %s242
      %p256 = scmp.eq.s32.totalorder %s40, 1
      %p257 = por %p255, %p256
      %p259 = scmp.ne.s32.totalorder %s242, %s258
      %p260 = scmp.eq.s32.totalorder %s40, 0
      %p261 = por %p259, %p260
      %s262 = ssub.s32 %s42, %s49
      %p263 = scmp.eq.s32.totalorder %s262, 0
      %s265 = sadd.s32 %s264, 1
      %s266 = scalar_select %p263, %s264, %s265
      %p269 = pneg %p263
      %p270 = scmp.eq.s32.totalorder %s34, 1
      %p271 = por %p269, %p270
      %p272 = scmp.ne.s32.totalorder %s264, %s267
      %p273 = scmp.eq.s32.totalorder %s34, 0
      %p274 = por %p272, %p273
      %p275 = scmp.ne.s32.totalorder %s264, %s267
      %p276 = scmp.eq.s32.totalorder %s39, 1
      %p277 = por %p275, %p276
      %p278 = scmp.ne.s32.totalorder %s267, %s268
      %p279 = scmp.eq.s32.totalorder %s39, 0
      %p280 = por %p278, %p279
      %p281 = scmp.ne.s32.totalorder %s267, %s268
      %p282 = scmp.eq.s32.totalorder %s40, 1
      %p283 = por %p281, %p282
      %p285 = scmp.ne.s32.totalorder %s268, %s284
      %p286 = scmp.eq.s32.totalorder %s40, 0
      %p287 = por %p285, %p286
      %s288 = ssub.s32 %s42, %s49
      %p289 = scmp.eq.s32.totalorder %s288, 0
      %s291 = sadd.s32 %s290, 1
      %s292 = scalar_select %p289, %s290, %s291
      %p295 = pneg %p289
      %p296 = scmp.eq.s32.totalorder %s34, 1
      %p297 = por %p295, %p296
      %p298 = scmp.ne.s32.totalorder %s290, %s293
      %p299 = scmp.eq.s32.totalorder %s34, 0
      %p300 = por %p298, %p299
      %p301 = scmp.ne.s32.totalorder %s290, %s293
      %p302 = scmp.eq.s32.totalorder %s39, 1
      %p303 = por %p301, %p302
      %p304 = scmp.ne.s32.totalorder %s293, %s294
      %p305 = scmp.eq.s32.totalorder %s39, 0
      %p306 = por %p304, %p305
      %p307 = scmp.ne.s32.totalorder %s293, %s294
      %p308 = scmp.eq.s32.totalorder %s40, 1
      %p309 = por %p307, %p308
      %p311 = scmp.ne.s32.totalorder %s294, %s310
      %p312 = scmp.eq.s32.totalorder %s40, 0
      %p313 = por %p311, %p312
      %s314 = ssub.s32 %s42, %s49
      %p315 = scmp.eq.s32.totalorder %s314, 0
      %s317 = sadd.s32 %s316, 1
      %s318 = scalar_select %p315, %s316, %s317
      %p321 = pneg %p315
      %p322 = scmp.eq.s32.totalorder %s34, 1
      %p323 = por %p321, %p322
      %p324 = scmp.ne.s32.totalorder %s316, %s319
      %p325 = scmp.eq.s32.totalorder %s34, 0
      %p326 = por %p324, %p325
      %p327 = scmp.ne.s32.totalorder %s316, %s319
      %p328 = scmp.eq.s32.totalorder %s39, 1
      %p329 = por %p327, %p328
      %p330 = scmp.ne.s32.totalorder %s319, %s320
      %p331 = scmp.eq.s32.totalorder %s39, 0
      %p332 = por %p330, %p331
      %p333 = scmp.ne.s32.totalorder %s319, %s320
      %p334 = scmp.eq.s32.totalorder %s40, 1
      %p335 = por %p333, %p334
      %p337 = scmp.ne.s32.totalorder %s320, %s336
      %p338 = scmp.eq.s32.totalorder %s40, 0
      %p339 = por %p337, %p338
      %s340 = ssub.s32 %s42, %s49
      %p341 = scmp.eq.s32.totalorder %s340, 0
      %s343 = sadd.s32 %s342, 1
      %s344 = scalar_select %p341, %s342, %s343
      %p347 = pneg %p341
      %p348 = scmp.eq.s32.totalorder %s34, 1
      %p349 = por %p347, %p348
      %p350 = scmp.ne.s32.totalorder %s342, %s345
      %p351 = scmp.eq.s32.totalorder %s34, 0
      %p352 = por %p350, %p351
      %p353 = scmp.ne.s32.totalorder %s342, %s345
      %p354 = scmp.eq.s32.totalorder %s39, 1
      %p355 = por %p353, %p354
      %p356 = scmp.ne.s32.totalorder %s345, %s346
      %p357 = scmp.eq.s32.totalorder %s39, 0
      %p358 = por %p356, %p357
      %p359 = scmp.ne.s32.totalorder %s345, %s346
      %p360 = scmp.eq.s32.totalorder %s40, 1
      %p361 = por %p359, %p360
      %p363 = scmp.ne.s32.totalorder %s346, %s362
      %p364 = scmp.eq.s32.totalorder %s40, 0
      %p365 = por %p363, %p364
      %s366 = ssub.s32 %s42, %s49
      %p367 = scmp.eq.s32.totalorder %s366, 0
      %s369 = sadd.s32 %s368, 1
      %s370 = scalar_select %p367, %s368, %s369
      %p373 = pneg %p367
      %p374 = scmp.eq.s32.totalorder %s34, 1
      %p375 = por %p373, %p374
      %p376 = scmp.ne.s32.totalorder %s368, %s371
      %p377 = scmp.eq.s32.totalorder %s34, 0
      %p378 = por %p376, %p377
      %p379 = scmp.ne.s32.totalorder %s368, %s371
      %p380 = scmp.eq.s32.totalorder %s39, 1
      %p381 = por %p379, %p380
      %p382 = scmp.ne.s32.totalorder %s371, %s372
      %p383 = scmp.eq.s32.totalorder %s39, 0
      %p384 = por %p382, %p383
      %p385 = scmp.ne.s32.totalorder %s371, %s372
      %p386 = scmp.eq.s32.totalorder %s40, 1
      %p387 = por %p385, %p386
      %p389 = scmp.ne.s32.totalorder %s372, %s388
      %p390 = scmp.eq.s32.totalorder %s40, 0
      %p391 = por %p389, %p390
      %s392 = ssub.s32 %s42, %s49
      %p393 = scmp.eq.s32.totalorder %s392, 0
      %s395 = sadd.s32 %s394, 1
      %s396 = scalar_select %p393, %s394, %s395
      %p399 = pneg %p393
      %p400 = scmp.eq.s32.totalorder %s34, 1
      %p401 = por %p399, %p400
      %p402 = scmp.ne.s32.totalorder %s394, %s397
      %p403 = scmp.eq.s32.totalorder %s34, 0
      %p404 = por %p402, %p403
      %p405 = scmp.ne.s32.totalorder %s394, %s397
      %p406 = scmp.eq.s32.totalorder %s39, 1
      %p407 = por %p405, %p406
      %p408 = scmp.ne.s32.totalorder %s397, %s398
      %p409 = scmp.eq.s32.totalorder %s39, 0
      %p410 = por %p408, %p409
      %p411 = scmp.ne.s32.totalorder %s397, %s398
      %p412 = scmp.eq.s32.totalorder %s40, 1
      %p413 = por %p411, %p412
      %p415 = scmp.ne.s32.totalorder %s398, %s414
      %p416 = scmp.eq.s32.totalorder %s40, 0
      %p417 = por %p415, %p416
      %s418 = ssub.s32 %s42, %s49
      %p419 = scmp.eq.s32.totalorder %s418, 0
      %s421 = sadd.s32 %s420, 1
      %s422 = scalar_select %p419, %s420, %s421
      %p425 = pneg %p419
      %p426 = scmp.eq.s32.totalorder %s34, 1
      %p427 = por %p425, %p426
      %p428 = scmp.ne.s32.totalorder %s420, %s423
      %p429 = scmp.eq.s32.totalorder %s34, 0
      %p430 = por %p428, %p429
      %p431 = scmp.ne.s32.totalorder %s420, %s423
      %p432 = scmp.eq.s32.totalorder %s39, 1
      %p433 = por %p431, %p432
      %p434 = scmp.ne.s32.totalorder %s423, %s424
      %p435 = scmp.eq.s32.totalorder %s39, 0
      %p436 = por %p434, %p435
      %p437 = scmp.ne.s32.totalorder %s423, %s424
      %p438 = scmp.eq.s32.totalorder %s40, 1
      %p439 = por %p437, %p438
      %p441 = scmp.ne.s32.totalorder %s424, %s440
      %p442 = scmp.eq.s32.totalorder %s40, 0
      %p443 = por %p441, %p442
      %s444 = ssub.s32 %s42, %s49
      %p445 = scmp.eq.s32.totalorder %s444, 0
      %s447 = sadd.s32 %s446, 1
      %s448 = scalar_select %p445, %s446, %s447
      %p451 = pneg %p445
      %p452 = scmp.eq.s32.totalorder %s34, 1
      %p453 = por %p451, %p452
      %p454 = scmp.ne.s32.totalorder %s446, %s449
      %p455 = scmp.eq.s32.totalorder %s34, 0
      %p456 = por %p454, %p455
      %p457 = scmp.ne.s32.totalorder %s446, %s449
      %p458 = scmp.eq.s32.totalorder %s39, 1
      %p459 = por %p457, %p458
      %p460 = scmp.ne.s32.totalorder %s449, %s450
      %p461 = scmp.eq.s32.totalorder %s39, 0
      %p462 = por %p460, %p461
      %p463 = scmp.ne.s32.totalorder %s449, %s450
      %p464 = scmp.eq.s32.totalorder %s40, 1
      %p465 = por %p463, %p464
      %p467 = scmp.ne.s32.totalorder %s450, %s466
      %p468 = scmp.eq.s32.totalorder %s40, 0
      %p469 = por %p467, %p468
      %s470 = ssub.s32 %s42, %s49
      %p471 = scmp.eq.s32.totalorder %s470, 0
      %s473 = sadd.s32 %s472, 1
      %s474 = scalar_select %p471, %s472, %s473
      %p477 = pneg %p471
      %p478 = scmp.eq.s32.totalorder %s34, 1
      %p479 = por %p477, %p478
      %p480 = scmp.ne.s32.totalorder %s472, %s475
      %p481 = scmp.eq.s32.totalorder %s34, 0
      %p482 = por %p480, %p481
      %p483 = scmp.ne.s32.totalorder %s472, %s475
      %p484 = scmp.eq.s32.totalorder %s39, 1
      %p485 = por %p483, %p484
      %p486 = scmp.ne.s32.totalorder %s475, %s476
      %p487 = scmp.eq.s32.totalorder %s39, 0
      %p488 = por %p486, %p487
      %p489 = scmp.ne.s32.totalorder %s475, %s476
      %p490 = scmp.eq.s32.totalorder %s40, 1
      %p491 = por %p489, %p490
      %p493 = scmp.ne.s32.totalorder %s476, %s492
      %p494 = scmp.eq.s32.totalorder %s40, 0
      %p495 = por %p493, %p494
      %s496 = ssub.s32 %s41, %s53
      %p497 = scmp.eq.s32.totalorder %s496, 0
      %s499 = sadd.s32 %s498, 1
      %s500 = scalar_select %p497, %s498, %s499
      %p503 = pneg %p497
      %p504 = scmp.eq.s32.totalorder %s34, 1
      %p505 = por %p503, %p504
      %p506 = scmp.ne.s32.totalorder %s498, %s501
      %p507 = scmp.eq.s32.totalorder %s34, 0
      %p508 = por %p506, %p507
      %p509 = scmp.ne.s32.totalorder %s498, %s501
      %p510 = scmp.eq.s32.totalorder %s39, 1
      %p511 = por %p509, %p510
      %p512 = scmp.ne.s32.totalorder %s501, %s502
      %p513 = scmp.eq.s32.totalorder %s39, 0
      %p514 = por %p512, %p513
      %p515 = scmp.ne.s32.totalorder %s501, %s502
      %p516 = scmp.eq.s32.totalorder %s40, 1
      %p517 = por %p515, %p516
      %p519 = scmp.ne.s32.totalorder %s502, %s518
      %p520 = scmp.eq.s32.totalorder %s40, 0
      %p521 = por %p519, %p520
      %p522 = scmp.le.s32.totalorder 1, %s34
      %p523 = scmp.lt.s32.totalorder %s34, 3
      %p524 = pnand %p522, %p523
      %p525 = pneg %p524
      // Predicated region
      $region9: #{tpu_custom_call.1} parent=5 // pred_check
        _
      $region10: #{tpu_custom_call.1} parent=5 // pred_check_branch
        %527 = sbr.rel (%p524) target = $region12
      $region11: #{tpu_custom_call.1} parent=5 // pred_region
        %s528 = ssub.s32 %s34, 1
        // Predicated region
        $region13: #{tpu_custom_call.1} parent=11 // pred_check
          %p529 = pneg %p72
        $region14: #{tpu_custom_call.1} parent=11 // pred_check_branch
          %531 = sbr.rel (%p529) target = $region16
        $region15: #{tpu_custom_call.1} parent=11 // pred_region
          %s532 = smul.u32 2, %s43
          %534 = vsyncadd [#allocation8], 0
          %s535 = smul.addr %s532, 8
          %s536 = scalar_lea.hbm %s0, %s535
          %s537 = sshll.u32 %s536, 4
          %s538 = int_to_ptr.hbm [resolvable:$true] %s537
          %s539 = sshll.u32 [#allocation7], 4
          %s540 = int_to_ptr.vmem [resolvable:$true] %s539
          %545 = dma.hbm_to_vmem [thread:$0]  %s538, 256, %s540, [#allocation8], 128, 128, 8
        $region16: #{tpu_custom_call.1} parent=11 // pred_fallthru
          _
      $region12: #{tpu_custom_call.1} parent=5 // pred_fallthru
        _
      %p546 = scmp.lt.s32.totalorder %s34, 2
      // Predicated region
      $region17: #{tpu_custom_call.1} parent=5 // pred_check
        %p547 = pneg %p546
      $region18: #{tpu_custom_call.1} parent=5 // pred_check_branch
        %549 = sbr.rel (%p547) target = $region20
      $region19: #{tpu_custom_call.1} parent=5 // pred_region
        // Predicated region
        $region21: #{tpu_custom_call.1} parent=19 // pred_check
          %p550 = pneg %p92
        $region22: #{tpu_custom_call.1} parent=19 // pred_check_branch
          %552 = sbr.rel (%p550) target = $region24
        $region23: #{tpu_custom_call.1} parent=19 // pred_region
          %p553 = scmp.lt.s32.totalorder %s42, 1
          %s554 = scalar_select %p553, %s42, 1
          %s555 = smul.addr %s554, 4
          %s556 = smul.addr %s555, 4
          %s557 = scalar_lea.vmem %s1, %s556
        $region24: #{tpu_custom_call.1} parent=19 // pred_fallthru
          _
        // Predicated region
        $region25: #{tpu_custom_call.1} parent=19 // pred_check
          %p558 = pneg %p118
        $region26: #{tpu_custom_call.1} parent=19 // pred_check_branch
          %560 = sbr.rel (%p558) target = $region28
        $region27: #{tpu_custom_call.1} parent=19 // pred_region
          %s561 = sand.u32 %s34, 1
          %s562 = scalar_lea.sflag [#allocation11], %s561
          %s563 = sand.u32 %s108, 1
          %s564 = scalar_lea.vmem [#allocation10], %s563
          %566 = vsyncadd %s562, 0
          %s567 = scalar_lea.hbm %s2, %s42
          %s569 = sshll.u32 %s567, 4
          %s570 = int_to_ptr.hbm [resolvable:$true] %s569
          %s571 = sshll.u32 %s564, 4
          %s572 = int_to_ptr.vmem [resolvable:$true] %s571
          %574 = dma.hbm_to_vmem [thread:$0]  %s570, 16, %s572, %s562
        $region28: #{tpu_custom_call.1} parent=19 // pred_fallthru
          _
        // Predicated region
        $region29: #{tpu_custom_call.1} parent=19 // pred_check
          %p575 = pneg %p144
        $region30: #{tpu_custom_call.1} parent=19 // pred_check_branch
          %577 = sbr.rel (%p575) target = $region32
        $region31: #{tpu_custom_call.1} parent=19 // pred_region
          %p578 = scmp.lt.s32.totalorder %s42, 1
          %s579 = scalar_select %p578, %s42, 1
          %s580 = smul.addr %s579, 4
          %s581 = smul.addr %s580, 4
          %s582 = scalar_lea.vmem %s3, %s581
        $region32: #{tpu_custom_call.1} parent=19 // pred_fallthru
          _
        // Predicated region
        $region33: #{tpu_custom_call.1} parent=19 // pred_check
          %p583 = pneg %p170
        $region34: #{tpu_custom_call.1} parent=19 // pred_check_branch
          %585 = sbr.rel (%p583) target = $region36
        $region35: #{tpu_custom_call.1} parent=19 // pred_region
          %p586 = scmp.lt.s32.totalorder %s42, 1
          %s587 = scalar_select %p586, %s42, 1
          %s588 = scalar_lea.vmem %s4, %s587
        $region36: #{tpu_custom_call.1} parent=19 // pred_fallthru
          _
        // Predicated region
        $region37: #{tpu_custom_call.1} parent=19 // pred_check
          %p589 = pneg %p196
        $region38: #{tpu_custom_call.1} parent=19 // pred_check_branch
          %591 = sbr.rel (%p589) target = $region40
        $region39: #{tpu_custom_call.1} parent=19 // pred_region
          %p592 = scmp.lt.s32.totalorder %s42, 1
          %s593 = scalar_select %p592, %s42, 1
          %s594 = smul.addr %s593, 4
          %s595 = smul.addr %s594, 4
          %s596 = scalar_lea.vmem %s5, %s595
        $region40: #{tpu_custom_call.1} parent=19 // pred_fallthru
          _
        // Predicated region
        $region41: #{tpu_custom_call.1} parent=19 // pred_check
          %p597 = pneg %p222
        $region42: #{tpu_custom_call.1} parent=19 // pred_check_branch
          %599 = sbr.rel (%p597) target = $region44
        $region43: #{tpu_custom_call.1} parent=19 // pred_region
          %p600 = scmp.lt.s32.totalorder %s42, 1
          %s601 = scalar_select %p600, %s42, 1
          %s602 = scalar_lea.vmem %s6, %s601
        $region44: #{tpu_custom_call.1} parent=19 // pred_fallthru
          _
        // Predicated region
        $region45: #{tpu_custom_call.1} parent=19 // pred_check
          %p603 = pneg %p248
        $region46: #{tpu_custom_call.1} parent=19 // pred_check_branch
          %605 = sbr.rel (%p603) target = $region48
        $region47: #{tpu_custom_call.1} parent=19 // pred_region
          %s606 = sand.u32 %s34, 1
          %s607 = scalar_lea.sflag [#allocation11], %s606
          %s608 = sand.u32 %s238, 1
          %s609 = smul.addr %s608, 16
          %s610 = scalar_lea.vmem [#allocation12], %s609
          %612 = vsyncadd %s607, 0
          %s613 = smul.addr %s42, 4
          %s614 = smul.addr %s613, 4
          %s615 = scalar_lea.hbm %s7, %s614
          %s616 = sshll.u32 %s615, 4
          %s617 = int_to_ptr.hbm [resolvable:$true] %s616
          %s618 = sshll.u32 %s610, 4
          %s619 = int_to_ptr.vmem [resolvable:$true] %s618
          %624 = dma.hbm_to_vmem [thread:$0]  %s617, 256, %s619, %s607, 64, 64, 4
        $region48: #{tpu_custom_call.1} parent=19 // pred_fallthru
          _
        // Predicated region
        $region49: #{tpu_custom_call.1} parent=19 // pred_check
          %p625 = pneg %p274
        $region50: #{tpu_custom_call.1} parent=19 // pred_check_branch
          %627 = sbr.rel (%p625) target = $region52
        $region51: #{tpu_custom_call.1} parent=19 // pred_region
          %p628 = scmp.lt.s32.totalorder %s42, 1
          %s629 = scalar_select %p628, %s42, 1
          %s630 = scalar_lea.vmem %s8, %s629
        $region52: #{tpu_custom_call.1} parent=19 // pred_fallthru
          _
        // Predicated region
        $region53: #{tpu_custom_call.1} parent=19 // pred_check
          %p631 = pneg %p300
        $region54: #{tpu_custom_call.1} parent=19 // pred_check_branch
          %633 = sbr.rel (%p631) target = $region56
        $region55: #{tpu_custom_call.1} parent=19 // pred_region
          %s634 = sand.u32 %s34, 1
          %s635 = scalar_lea.sflag [#allocation14], %s634
          %s636 = sand.u32 %s290, 1
          %s637 = scalar_lea.vmem [#allocation13], %s636
          %639 = vsyncadd %s635, 0
          %s640 = scalar_lea.hbm %s9, %s42
          %s642 = sshll.u32 %s640, 4
          %s643 = int_to_ptr.hbm [resolvable:$true] %s642
          %s644 = sshll.u32 %s637, 4
          %s645 = int_to_ptr.vmem [resolvable:$true] %s644
          %647 = dma.hbm_to_vmem [thread:$0]  %s643, 16, %s645, %s635
        $region56: #{tpu_custom_call.1} parent=19 // pred_fallthru
          _
        // Predicated region
        $region57: #{tpu_custom_call.1} parent=19 // pred_check
          %p648 = pneg %p326
        $region58: #{tpu_custom_call.1} parent=19 // pred_check_branch
          %650 = sbr.rel (%p648) target = $region60
        $region59: #{tpu_custom_call.1} parent=19 // pred_region
          %p651 = scmp.lt.s32.totalorder %s42, 1
          %s652 = scalar_select %p651, %s42, 1
          %s653 = scalar_lea.vmem %s10, %s652
        $region60: #{tpu_custom_call.1} parent=19 // pred_fallthru
          _
        // Predicated region
        $region61: #{tpu_custom_call.1} parent=19 // pred_check
          %p654 = pneg %p352
        $region62: #{tpu_custom_call.1} parent=19 // pred_check_branch
          %656 = sbr.rel (%p654) target = $region64
        $region63: #{tpu_custom_call.1} parent=19 // pred_region
          %s657 = sand.u32 %s34, 1
          %s658 = scalar_lea.sflag [#allocation14], %s657
          %s659 = sand.u32 %s342, 1
          %s660 = smul.addr %s659, 16
          %s661 = scalar_lea.vmem [#allocation15], %s660
          %663 = vsyncadd %s658, 0
          %s664 = smul.addr %s42, 4
          %s665 = smul.addr %s664, 4
          %s666 = scalar_lea.hbm %s11, %s665
          %s667 = sshll.u32 %s666, 4
          %s668 = int_to_ptr.hbm [resolvable:$true] %s667
          %s669 = sshll.u32 %s661, 4
          %s670 = int_to_ptr.vmem [resolvable:$true] %s669
          %675 = dma.hbm_to_vmem [thread:$0]  %s668, 256, %s670, %s658, 64, 64, 4
        $region64: #{tpu_custom_call.1} parent=19 // pred_fallthru
          _
        // Predicated region
        $region65: #{tpu_custom_call.1} parent=19 // pred_check
          %p676 = pneg %p378
        $region66: #{tpu_custom_call.1} parent=19 // pred_check_branch
          %678 = sbr.rel (%p676) target = $region68
        $region67: #{tpu_custom_call.1} parent=19 // pred_region
          %p679 = scmp.lt.s32.totalorder %s42, 1
          %s680 = scalar_select %p679, %s42, 1
          %s681 = scalar_lea.vmem %s12, %s680
        $region68: #{tpu_custom_call.1} parent=19 // pred_fallthru
          _
        // Predicated region
        $region69: #{tpu_custom_call.1} parent=19 // pred_check
          %p682 = pneg %p404
        $region70: #{tpu_custom_call.1} parent=19 // pred_check_branch
          %684 = sbr.rel (%p682) target = $region72
        $region71: #{tpu_custom_call.1} parent=19 // pred_region
          %p685 = scmp.lt.s32.totalorder %s42, 1
          %s686 = scalar_select %p685, %s42, 1
          %s687 = smul.addr %s686, 8
          %s688 = smul.addr %s687, 4
          %s689 = scalar_lea.vmem %s13, %s688
        $region72: #{tpu_custom_call.1} parent=19 // pred_fallthru
          _
        // Predicated region
        $region73: #{tpu_custom_call.1} parent=19 // pred_check
          %p690 = pneg %p430
        $region74: #{tpu_custom_call.1} parent=19 // pred_check_branch
          %692 = sbr.rel (%p690) target = $region76
        $region75: #{tpu_custom_call.1} parent=19 // pred_region
          %p693 = scmp.lt.s32.totalorder %s42, 1
          %s694 = scalar_select %p693, %s42, 1
          %s695 = scalar_lea.vmem %s14, %s694
        $region76: #{tpu_custom_call.1} parent=19 // pred_fallthru
          _
        // Predicated region
        $region77: #{tpu_custom_call.1} parent=19 // pred_check
          %p696 = pneg %p456
        $region78: #{tpu_custom_call.1} parent=19 // pred_check_branch
          %698 = sbr.rel (%p696) target = $region80
        $region79: #{tpu_custom_call.1} parent=19 // pred_region
          %s699 = sand.u32 %s446, 1
          %s700 = scalar_lea.sflag [#allocation17], %s699
          %s701 = sand.u32 %s446, 1
          %s702 = scalar_lea.vmem [#allocation16], %s701
          %704 = vsyncadd %s700, 0
          %s705 = scalar_lea.hbm %s15, %s42
          %s707 = sshll.u32 %s705, 4
          %s708 = int_to_ptr.hbm [resolvable:$true] %s707
          %s709 = sshll.u32 %s702, 4
          %s710 = int_to_ptr.vmem [resolvable:$true] %s709
          %712 = dma.hbm_to_vmem [thread:$0]  %s708, 16, %s710, %s700
        $region80: #{tpu_custom_call.1} parent=19 // pred_fallthru
          _
        // Predicated region
        $region81: #{tpu_custom_call.1} parent=19 // pred_check
          %p713 = pneg %p482
        $region82: #{tpu_custom_call.1} parent=19 // pred_check_branch
          %715 = sbr.rel (%p713) target = $region84
        $region83: #{tpu_custom_call.1} parent=19 // pred_region
          %p716 = scmp.lt.s32.totalorder %s42, 1
          %s717 = scalar_select %p716, %s42, 1
          %s718 = scalar_lea.vmem %s16, %s717
        $region84: #{tpu_custom_call.1} parent=19 // pred_fallthru
          _
      $region20: #{tpu_custom_call.1} parent=5 // pred_fallthru
        _
      %p719 = scmp.le.s32.totalorder 1, %s34
      %p720 = scmp.lt.s32.totalorder %s34, 3
      %p721 = pnand %p719, %p720
      %p722 = pneg %p721
      // Predicated region
      $region85: #{tpu_custom_call.1} parent=5 // pred_check
        _
      $region86: #{tpu_custom_call.1} parent=5 // pred_check_branch
        %724 = sbr.rel (%p721) target = $region88
      $region87: #{tpu_custom_call.1} parent=5 // pred_region
        %s725 = ssub.s32 %s34, 1
        // Predicated region
        $region89: #{tpu_custom_call.1} parent=87 // pred_check
          %p726 = pneg %p72
        $region90: #{tpu_custom_call.1} parent=87 // pred_check_branch
          %728 = sbr.rel (%p726) target = $region92
        $region91: #{tpu_custom_call.1} parent=87 // pred_region
          %730 = dma.done [#allocation8], 256
        $region92: #{tpu_custom_call.1} parent=87 // pred_fallthru
          _
        %s731 = sand.u32 %s39, 1
        %s732 = scalar_lea.sflag [#allocation11], %s731
        %s733 = sand.u32 %s111, 1
        %s734 = scalar_lea.vmem [#allocation10], %s733
        // Predicated region
        $region93: #{tpu_custom_call.1} parent=87 // pred_check
          %p735 = pneg %p124
        $region94: #{tpu_custom_call.1} parent=87 // pred_check_branch
          %737 = sbr.rel (%p735) target = $region96
        $region95: #{tpu_custom_call.1} parent=87 // pred_region
          %739 = dma.done %s732, 16
        $region96: #{tpu_custom_call.1} parent=87 // pred_fallthru
          _
        %s740 = sand.u32 %s39, 1
        %s741 = scalar_lea.sflag [#allocation11], %s740
        %s742 = sand.u32 %s241, 1
        %s743 = smul.addr %s742, 16
        %s744 = scalar_lea.vmem [#allocation12], %s743
        // Predicated region
        $region97: #{tpu_custom_call.1} parent=87 // pred_check
          %p745 = pneg %p254
        $region98: #{tpu_custom_call.1} parent=87 // pred_check_branch
          %747 = sbr.rel (%p745) target = $region100
        $region99: #{tpu_custom_call.1} parent=87 // pred_region
          %749 = dma.done %s741, 256
        $region100: #{tpu_custom_call.1} parent=87 // pred_fallthru
          _
        %s750 = sand.u32 %s39, 1
        %s751 = scalar_lea.sflag [#allocation14], %s750
        %s752 = sand.u32 %s293, 1
        %s753 = scalar_lea.vmem [#allocation13], %s752
        // Predicated region
        $region101: #{tpu_custom_call.1} parent=87 // pred_check
          %p754 = pneg %p306
        $region102: #{tpu_custom_call.1} parent=87 // pred_check_branch
          %756 = sbr.rel (%p754) target = $region104
        $region103: #{tpu_custom_call.1} parent=87 // pred_region
          %758 = dma.done %s751, 16
        $region104: #{tpu_custom_call.1} parent=87 // pred_fallthru
          _
        %s759 = sand.u32 %s39, 1
        %s760 = scalar_lea.sflag [#allocation14], %s759
        %s761 = sand.u32 %s345, 1
        %s762 = smul.addr %s761, 16
        %s763 = scalar_lea.vmem [#allocation15], %s762
        // Predicated region
        $region105: #{tpu_custom_call.1} parent=87 // pred_check
          %p764 = pneg %p358
        $region106: #{tpu_custom_call.1} parent=87 // pred_check_branch
          %766 = sbr.rel (%p764) target = $region108
        $region107: #{tpu_custom_call.1} parent=87 // pred_region
          %768 = dma.done %s760, 256
        $region108: #{tpu_custom_call.1} parent=87 // pred_fallthru
          _
        %s769 = sand.u32 %s449, 1
        %s770 = scalar_lea.sflag [#allocation17], %s769
        %s771 = sand.u32 %s449, 1
        %s772 = scalar_lea.vmem [#allocation16], %s771
        // Predicated region
        $region109: #{tpu_custom_call.1} parent=87 // pred_check
          %p773 = pneg %p462
        $region110: #{tpu_custom_call.1} parent=87 // pred_check_branch
          %775 = sbr.rel (%p773) target = $region112
        $region111: #{tpu_custom_call.1} parent=87 // pred_region
          %777 = dma.done %s770, 16
        $region112: #{tpu_custom_call.1} parent=87 // pred_fallthru
          _
        %p778 = pneg %p72
        %p779 = pneg %p69
        %p780 = scmp.lt.s32.totalorder %s44, 1
        %s781 = scalar_select %p780, %s44, 1
        %s782 = smul.addr %s781, 4
        %s783 = smul.addr %s782, 4
        %s784 = scalar_lea.vmem %s1, %s783
        %p785 = pneg %p98
        %p786 = pneg %p95
        %s787 = sand.u32 %s39, 1
        %s788 = scalar_lea.sflag [#allocation11], %s787
        %s789 = sand.u32 %s111, 1
        %s790 = scalar_lea.vmem [#allocation10], %s789
        %p791 = pneg %p124
        %p792 = pneg %p121
        %p793 = scmp.lt.s32.totalorder %s44, 1
        %s794 = scalar_select %p793, %s44, 1
        %s795 = smul.addr %s794, 4
        %s796 = smul.addr %s795, 4
        %s797 = scalar_lea.vmem %s3, %s796
        %p798 = pneg %p150
        %p799 = pneg %p147
        %p800 = scmp.lt.s32.totalorder %s44, 1
        %s801 = scalar_select %p800, %s44, 1
        %s802 = scalar_lea.vmem %s4, %s801
        %p803 = pneg %p176
        %p804 = pneg %p173
        %p805 = scmp.lt.s32.totalorder %s44, 1
        %s806 = scalar_select %p805, %s44, 1
        %s807 = smul.addr %s806, 4
        %s808 = smul.addr %s807, 4
        %s809 = scalar_lea.vmem %s5, %s808
        %p810 = pneg %p202
        %p811 = pneg %p199
        %p812 = scmp.lt.s32.totalorder %s44, 1
        %s813 = scalar_select %p812, %s44, 1
        %s814 = scalar_lea.vmem %s6, %s813
        %p815 = pneg %p228
        %p816 = pneg %p225
        %s817 = sand.u32 %s39, 1
        %s818 = scalar_lea.sflag [#allocation11], %s817
        %s819 = sand.u32 %s241, 1
        %s820 = smul.addr %s819, 16
        %s821 = scalar_lea.vmem [#allocation12], %s820
        %p822 = pneg %p254
        %p823 = pneg %p251
        %p824 = scmp.lt.s32.totalorder %s44, 1
        %s825 = scalar_select %p824, %s44, 1
        %s826 = scalar_lea.vmem %s8, %s825
        %p827 = pneg %p280
        %p828 = pneg %p277
        %s829 = sand.u32 %s39, 1
        %s830 = scalar_lea.sflag [#allocation14], %s829
        %s831 = sand.u32 %s293, 1
        %s832 = scalar_lea.vmem [#allocation13], %s831
        %p833 = pneg %p306
        %p834 = pneg %p303
        %p835 = scmp.lt.s32.totalorder %s44, 1
        %s836 = scalar_select %p835, %s44, 1
        %s837 = scalar_lea.vmem %s10, %s836
        %p838 = pneg %p332
        %p839 = pneg %p329
        %s840 = sand.u32 %s39, 1
        %s841 = scalar_lea.sflag [#allocation14], %s840
        %s842 = sand.u32 %s345, 1
        %s843 = smul.addr %s842, 16
        %s844 = scalar_lea.vmem [#allocation15], %s843
        %p845 = pneg %p358
        %p846 = pneg %p355
        %p847 = scmp.lt.s32.totalorder %s44, 1
        %s848 = scalar_select %p847, %s44, 1
        %s849 = scalar_lea.vmem %s12, %s848
        %p850 = pneg %p384
        %p851 = pneg %p381
        %p852 = scmp.lt.s32.totalorder %s44, 1
        %s853 = scalar_select %p852, %s44, 1
        %s854 = smul.addr %s853, 8
        %s855 = smul.addr %s854, 4
        %s856 = scalar_lea.vmem %s13, %s855
        %p857 = pneg %p410
        %p858 = pneg %p407
        %p859 = scmp.lt.s32.totalorder %s44, 1
        %s860 = scalar_select %p859, %s44, 1
        %s861 = scalar_lea.vmem %s14, %s860
        %p862 = pneg %p436
        %p863 = pneg %p433
        %s864 = sand.u32 %s449, 1
        %s865 = scalar_lea.sflag [#allocation17], %s864
        %s866 = sand.u32 %s449, 1
        %s867 = scalar_lea.vmem [#allocation16], %s866
        %p868 = pneg %p462
        %p869 = pneg %p459
        %p870 = scmp.lt.s32.totalorder %s44, 1
        %s871 = scalar_select %p870, %s44, 1
        %s872 = scalar_lea.vmem %s16, %s871
        %p873 = pneg %p488
        %p874 = pneg %p485
        %p875 = pneg %p514
        %p876 = pneg %p511
        %s877 = smul.u32 2, %s43
        %p878 = scmp.lt.s32.totalorder %s44, 1
        %s879 = scalar_select %p878, %s44, 1
        %s880 = smul.addr %s879, 4
        %s881 = smul.addr %s880, 4
        %s882 = scalar_lea.vmem %s1, %s881
        %p883 = scmp.lt.s32.totalorder %s44, 1
        %s884 = scalar_select %p883, %s44, 1
        %s885 = smul.addr %s884, 4
        %s886 = smul.addr %s885, 4
        %s887 = scalar_lea.vmem %s3, %s886
        %p888 = scmp.lt.s32.totalorder %s44, 1
        %s889 = scalar_select %p888, %s44, 1
        %s890 = scalar_lea.vmem %s4, %s889
        %p891 = scmp.lt.s32.totalorder %s44, 1
        %s892 = scalar_select %p891, %s44, 1
        %s893 = smul.addr %s892, 4
        %s894 = smul.addr %s893, 4
        %s895 = scalar_lea.vmem %s5, %s894
        %p896 = scmp.lt.s32.totalorder %s44, 1
        %s897 = scalar_select %p896, %s44, 1
        %s898 = scalar_lea.vmem %s6, %s897
        %p899 = scmp.lt.s32.totalorder %s44, 1
        %s900 = scalar_select %p899, %s44, 1
        %s901 = scalar_lea.vmem %s8, %s900
        %p902 = scmp.lt.s32.totalorder %s44, 1
        %s903 = scalar_select %p902, %s44, 1
        %s904 = scalar_lea.vmem %s10, %s903
        %p905 = scmp.lt.s32.totalorder %s44, 1
        %s906 = scalar_select %p905, %s44, 1
        %s907 = scalar_lea.vmem %s12, %s906
        %p908 = scmp.lt.s32.totalorder %s44, 1
        %s909 = scalar_select %p908, %s44, 1
        %s910 = smul.addr %s909, 8
        %s911 = smul.addr %s910, 4
        %s912 = scalar_lea.vmem %s13, %s911
        %p913 = scmp.lt.s32.totalorder %s44, 1
        %s914 = scalar_select %p913, %s44, 1
        %s915 = scalar_lea.vmem %s14, %s914
        %p916 = scmp.lt.s32.totalorder %s44, 1
        %s917 = scalar_select %p916, %s44, 1
        %s918 = scalar_lea.vmem %s16, %s917
        %s919 = smul.u32 2, %s43
        %p921 = scmp.eq.s32.totalorder %s44, 0
        // Predicated region
        $region113: #{tpu_custom_call.1} parent=87 // pred_check
          %p922 = pneg %p921
        $region114: #{tpu_custom_call.1} parent=87 // pred_check_branch
          %924 = sbr.rel (%p922) target = $region116
        $region115: #{tpu_custom_call.1} parent=87 // pred_region
          %v925 = vld [vmem:[#allocation7] sm:$0xff]
          %v926 = vld [vmem:[#allocation7 + $0x8] sm:$0xff]
          %vm927 = vcmask 261120
          %928 = vst.msk [vmem:[#allocation2] sm:$0xff] %vm927, %v925
          %929 = vst.msk [vmem:[#allocation2 + $0x8] sm:$0xff] %vm927, %v926
        $region116: #{tpu_custom_call.1} parent=87 // pred_fallthru
          _
        %v930 = vld [vmem:[#allocation2] sm:$0xff]
        %v931 = vld [vmem:[#allocation2 + $0x8] sm:$0xff]
        %v932 = vpack.c.bf16 %v931, %v930
        %v933 = vld [vmem:[%s882] sm:$0xf]
        %v934 = vld [vmem:[%s882 + $0x4] sm:$0xf]
        %v935 = vld [vmem:[%s882 + $0x8] sm:$0xf]
        %v936 = vld [vmem:[%s882 + $0xc] sm:$0xf]
        %v937 = vld [vmem:[%s734] sm:$0x1]
        %v939 = vperm.slane %v937, 0
        %v945 = vunpack.c.l.b16 %v933
        %v946 = vunpack.c.l.b16 %v934
        %v947 = vunpack.c.l.b16 %v935
        %v948 = vunpack.c.l.b16 %v936
        %v949 = vpack.c.b16 %v946, %v945
        %v950 = vpack.c.b16 %v948, %v947
        %vm953 = vcmask 261120
        %v955 = vsel %vm953, %v932, 0
        %957 = vmatpush.bf16.msra.mxu0 0
        %958 = vmatpush.bf16.msra.mxu0 0
        %959 = vmatpush.bf16.msra.mxu0 0
        %960 = vmatpush.bf16.msra.mxu0 0
        %961 = vmatpush.bf16.msra.mxu0 0
        %962 = vmatpush.bf16.msra.mxu0 0
        %963 = vmatpush.bf16.msra.mxu0 %v950
        %964 = vmatpush.bf16.msra.mxu0 %v949
        %965 = vmatmul.bf16.gmra.mxu0 %v955
        %v966 = vpop.f32.mrf.mxu0
        %v967 = vadd.f32 %v939, %v966
        %v968 = vpop.f32.mrf.mxu0
        %v969 = vadd.f32 %v939, %v968
        %970 = vdwg.mxu0
        %v971 = vpack.c.bf16 %v967, %v967
        %v972 = vpack.c.bf16 %v969, %v969
        %vm973 = vcmask 257024
        %974 = vst.msk [vmem:[#allocation3] sm:$0xf] %vm973, %v971
        %975 = vst.msk [vmem:[#allocation3 + $0x4] sm:$0xf] %vm973, %v972
        %v976 = vld [vmem:[%s887] sm:$0xf]
        %v977 = vld [vmem:[%s887 + $0x4] sm:$0xf]
        %v978 = vld [vmem:[%s887 + $0x8] sm:$0xf]
        %v979 = vld [vmem:[%s887 + $0xc] sm:$0xf]
        %v980 = vld [vmem:[%s890] sm:$0x1]
        %v982 = vperm.slane %v980, 0
        %v988 = vunpack.c.l.b16 %v976
        %v989 = vunpack.c.l.b16 %v977
        %v990 = vunpack.c.l.b16 %v978
        %v991 = vunpack.c.l.b16 %v979
        %v992 = vpack.c.b16 %v989, %v988
        %v993 = vpack.c.b16 %v991, %v990
        %996 = vmatpush.bf16.msra.mxu0 0
        %997 = vmatpush.bf16.msra.mxu0 0
        %998 = vmatpush.bf16.msra.mxu0 0
        %999 = vmatpush.bf16.msra.mxu0 0
        %1000 = vmatpush.bf16.msra.mxu0 0
        %1001 = vmatpush.bf16.msra.mxu0 0
        %1002 = vmatpush.bf16.msra.mxu0 %v993
        %1003 = vmatpush.bf16.msra.mxu0 %v992
        %1004 = vmatmul.bf16.gmra.mxu0 %v955
        %v1005 = vpop.f32.mrf.mxu0
        %v1006 = vadd.f32 %v982, %v1005
        %v1007 = vpop.f32.mrf.mxu0
        %v1008 = vadd.f32 %v982, %v1007
        %1009 = vdwg.mxu0
        %v1010 = vpack.c.bf16 %v1006, %v1006
        %v1011 = vpack.c.bf16 %v1008, %v1008
        %1012 = vst.msk [vmem:[#allocation4] sm:$0xf] %vm973, %v1010
        %1013 = vst.msk [vmem:[#allocation4 + $0x4] sm:$0xf] %vm973, %v1011
        %v1014 = vld [vmem:[%s895] sm:$0xf]
        %v1015 = vld [vmem:[%s895 + $0x4] sm:$0xf]
        %v1016 = vld [vmem:[%s895 + $0x8] sm:$0xf]
        %v1017 = vld [vmem:[%s895 + $0xc] sm:$0xf]
        %v1018 = vld [vmem:[%s898] sm:$0x1]
        %v1020 = vperm.slane %v1018, 0
        %v1026 = vunpack.c.l.b16 %v1014
        %v1027 = vunpack.c.l.b16 %v1015
        %v1028 = vunpack.c.l.b16 %v1016
        %v1029 = vunpack.c.l.b16 %v1017
        %v1030 = vpack.c.b16 %v1027, %v1026
        %v1031 = vpack.c.b16 %v1029, %v1028
        %1034 = vmatpush.bf16.msra.mxu0 0
        %1035 = vmatpush.bf16.msra.mxu0 0
        %1036 = vmatpush.bf16.msra.mxu0 0
        %1037 = vmatpush.bf16.msra.mxu0 0
        %1038 = vmatpush.bf16.msra.mxu0 0
        %1039 = vmatpush.bf16.msra.mxu0 0
        %1040 = vmatpush.bf16.msra.mxu0 %v1031
        %1041 = vmatpush.bf16.msra.mxu0 %v1030
        %1042 = vmatmul.bf16.gmra.mxu0 %v955
        %v1043 = vpop.f32.mrf.mxu0
        %v1044 = vadd.f32 %v1020, %v1043
        %v1045 = vpop.f32.mrf.mxu0
        %v1046 = vadd.f32 %v1020, %v1045
        %1047 = vdwg.mxu0
        %v1048 = vpack.c.bf16 %v1044, %v1044
        %v1049 = vpack.c.bf16 %v1046, %v1046
        %1050 = vst.msk [vmem:[#allocation5] sm:$0xf] %vm973, %v1048
        %1051 = vst.msk [vmem:[#allocation5 + $0x4] sm:$0xf] %vm973, %v1049
        %v1052 = vlaneseq
        %v1053 = vshrl.u32 %v1052, 7
        %v1054 = vld [vmem:[#allocation3] sm:$0xf]
        %v1055 = vld [vmem:[#allocation4] sm:$0xf]
        %v1056 = vld [vmem:[#allocation5] sm:$0xf]
        %v1057 = vlaneseq
        %v1058 = vand.u32 %v1057, 127
        %vm1059 = vcmp.ge.s32.totalorder %v1053, %v1058
        %vm1060 = vcmask 64512
        %v1062 = vsel %vm1060, %v1054, 0
        %v1065 = vsel %vm1060, %v1055, 0
        %1067 = vmatpush.bf16.xpose.msra.mxu0 0
        %1068 = vmatpush.bf16.xpose.msra.mxu0 0
        %1069 = vmatpush.bf16.xpose.msra.mxu0 0
        %1070 = vmatpush.bf16.xpose.msra.mxu0 0
        %1071 = vmatpush.bf16.xpose.msra.mxu0 0
        %1072 = vmatpush.bf16.xpose.msra.mxu0 0
        %1073 = vmatpush.bf16.xpose.msra.mxu0 0
        %1074 = vmatpush.bf16.xpose.msra.mxu0 %v1065
        %1075 = vmatmul.bf16.gmra.mxu0 %v1062
        %v1076 = vpop.f32.mrf.mxu0
        %v1077 = vadd.f32 0.0, %v1076
        %v1078 = vpop.f32.mrf.mxu0
        %1079 = vdwg.mxu0
        %v1080 = vmul.f32 %v1077, 0.35355338
        %v1081 = vsel %vm1059, %v1080, 0.0
        %vm1082 = vcmp.eq.f32.partialorder %v1081, 0.0
        %v1083 = vsel %vm1082, -inf, %v1081
        %v1084 = vsel %vm1060, %v1083, -inf
        %1085 = vmax.xlane.f32.xlu0 %v1084
        %v1086 = vpop.xlane.xlu0 %1085
        %vm1087 = vcmp.eq.f32.partialorder %v1086, -inf
        %v1088 = vsel %vm1087, 0.0, %v1086
        %v1089 = vsub.f32 -inf, %v1088
        %v1090 = vmul.f32 %v1089, 1.442695
        %v1091 = vpow.pop %v1090
        %v1092 = vsub.f32 %v1083, %v1088
        %v1093 = vmul.f32 %v1092, 1.442695
        %v1094 = vpow.pop %v1093
        %v1095 = vmul.f32 %v1091, 0.0
        %v1096 = vsel %vm1060, %v1094, 0.0
        %1097 = vadd.xlane.f32.xlu0 %v1096
        %v1098 = vpop.xlane.xlu0 %1097
        %v1099 = vadd.f32 %v1095, %v1098
        %v1100 = vpack.c.bf16 %v1094, %v1094
        %v1102 = vsel %vm1060, %v1100, 0
        %vm1104 = vcmask 1043456
        %v1106 = vsel %vm1104, %v1056, 0
        %1108 = vmatpush.bf16.msra.mxu0 0
        %1109 = vmatpush.bf16.msra.mxu0 0
        %1110 = vmatpush.bf16.msra.mxu0 0
        %1111 = vmatpush.bf16.msra.mxu0 0
        %1112 = vmatpush.bf16.msra.mxu0 0
        %1113 = vmatpush.bf16.msra.mxu0 0
        %1114 = vmatpush.bf16.msra.mxu0 0
        %1115 = vmatpush.bf16.msra.mxu0 %v1106
        %1116 = vmatmul.bf16.gmra.mxu0 %v1102
        %v1117 = vpop.f32.mrf.mxu0
        %v1118 = vadd.f32 0.0, %v1117
        %v1119 = vpop.f32.mrf.mxu0
        %1120 = vdwg.mxu0
        %v1121 = vadd.f32 %v1095, %v1118
        %v1123 = vunpack.c.l.b16 %v1054
        %v1124 = vpack.c.b16 %v1123, %v1123
        %1125 = vrot.lane.b32.xlu0 %v1124, 120
        %v1126 = vpop.permute.xlu0 %1125
        %v1128 = vunpack.c.l.b16 %v1055
        %v1129 = vpack.c.b16 %v1128, %v1128
        %1130 = vrot.lane.b32.xlu0 %v1129, 120
        %v1131 = vpop.permute.xlu0 %1130
        %v1133 = vsel %vm1060, %v1126, 0
        %v1136 = vsel %vm1060, %v1131, 0
        %1138 = vmatpush.bf16.xpose.msra.mxu0 0
        %1139 = vmatpush.bf16.xpose.msra.mxu0 0
        %1140 = vmatpush.bf16.xpose.msra.mxu0 0
        %1141 = vmatpush.bf16.xpose.msra.mxu0 0
        %1142 = vmatpush.bf16.xpose.msra.mxu0 0
        %1143 = vmatpush.bf16.xpose.msra.mxu0 0
        %1144 = vmatpush.bf16.xpose.msra.mxu0 0
        %1145 = vmatpush.bf16.xpose.msra.mxu0 %v1136
        %1146 = vmatmul.bf16.gmra.mxu0 %v1133
        %v1147 = vpop.f32.mrf.mxu0
        %v1148 = vadd.f32 0.0, %v1147
        %v1149 = vpop.f32.mrf.mxu0
        %1150 = vdwg.mxu0
        %v1151 = vmul.f32 %v1148, 0.35355338
        %v1152 = vsel %vm1059, %v1151, 0.0
        %vm1153 = vcmp.eq.f32.partialorder %v1152, 0.0
        %v1154 = vsel %vm1153, -inf, %v1152
        %v1155 = vsel %vm1060, %v1154, -inf
        %1156 = vmax.xlane.f32.xlu0 %v1155
        %v1157 = vpop.xlane.xlu0 %1156
        %vm1158 = vcmp.eq.f32.partialorder %v1157, -inf
        %v1159 = vsel %vm1158, 0.0, %v1157
        %v1160 = vsub.f32 -inf, %v1159
        %v1161 = vmul.f32 %v1160, 1.442695
        %v1162 = vpow.pop %v1161
        %v1163 = vsub.f32 %v1154, %v1159
        %v1164 = vmul.f32 %v1163, 1.442695
        %v1165 = vpow.pop %v1164
        %v1166 = vmul.f32 %v1162, 0.0
        %v1167 = vsel %vm1060, %v1165, 0.0
        %1168 = vadd.xlane.f32.xlu0 %v1167
        %v1169 = vpop.xlane.xlu0 %1168
        %v1170 = vadd.f32 %v1166, %v1169
        %v1171 = vpack.c.bf16 %v1165, %v1165
        %v1173 = vunpack.c.l.b16 %v1056
        %v1174 = vpack.c.b16 %v1173, %v1173
        %1175 = vrot.lane.b32.xlu0 %v1174, 120
        %v1176 = vpop.permute.xlu0 %1175
        %v1178 = vsel %vm1060, %v1171, 0
        %v1181 = vsel %vm1104, %v1176, 0
        %1183 = vmatpush.bf16.msra.mxu0 0
        %1184 = vmatpush.bf16.msra.mxu0 0
        %1185 = vmatpush.bf16.msra.mxu0 0
        %1186 = vmatpush.bf16.msra.mxu0 0
        %1187 = vmatpush.bf16.msra.mxu0 0
        %1188 = vmatpush.bf16.msra.mxu0 0
        %1189 = vmatpush.bf16.msra.mxu0 0
        %1190 = vmatpush.bf16.msra.mxu0 %v1181
        %1191 = vmatmul.bf16.gmra.mxu0 %v1178
        %v1192 = vpop.f32.mrf.mxu0
        %v1193 = vadd.f32 0.0, %v1192
        %v1194 = vpop.f32.mrf.mxu0
        %1195 = vdwg.mxu0
        %v1196 = vadd.f32 %v1166, %v1193
        %1197 = vrot.lane.b32.xlu0 %v1124, 112
        %v1198 = vpop.permute.xlu0 %1197
        %1199 = vrot.lane.b32.xlu0 %v1129, 112
        %v1200 = vpop.permute.xlu0 %1199
        %v1202 = vsel %vm1060, %v1198, 0
        %v1205 = vsel %vm1060, %v1200, 0
        %1207 = vmatpush.bf16.xpose.msra.mxu0 0
        %1208 = vmatpush.bf16.xpose.msra.mxu0 0
        %1209 = vmatpush.bf16.xpose.msra.mxu0 0
        %1210 = vmatpush.bf16.xpose.msra.mxu0 0
        %1211 = vmatpush.bf16.xpose.msra.mxu0 0
        %1212 = vmatpush.bf16.xpose.msra.mxu0 0
        %1213 = vmatpush.bf16.xpose.msra.mxu0 0
        %1214 = vmatpush.bf16.xpose.msra.mxu0 %v1205
        %1215 = vmatmul.bf16.gmra.mxu0 %v1202
        %v1216 = vpop.f32.mrf.mxu0
        %v1217 = vadd.f32 0.0, %v1216
        %v1218 = vpop.f32.mrf.mxu0
        %1219 = vdwg.mxu0
        %v1220 = vmul.f32 %v1217, 0.35355338
        %v1221 = vsel %vm1059, %v1220, 0.0
        %vm1222 = vcmp.eq.f32.partialorder %v1221, 0.0
        %v1223 = vsel %vm1222, -inf, %v1221
        %v1224 = vsel %vm1060, %v1223, -inf
        %1225 = vmax.xlane.f32.xlu0 %v1224
        %v1226 = vpop.xlane.xlu0 %1225
        %vm1227 = vcmp.eq.f32.partialorder %v1226, -inf
        %v1228 = vsel %vm1227, 0.0, %v1226
        %v1229 = vsub.f32 -inf, %v1228
        %v1230 = vmul.f32 %v1229, 1.442695
        %v1231 = vpow.pop %v1230
        %v1232 = vsub.f32 %v1223, %v1228
        %v1233 = vmul.f32 %v1232, 1.442695
        %v1234 = vpow.pop %v1233
        %v1235 = vmul.f32 %v1231, 0.0
        %v1236 = vsel %vm1060, %v1234, 0.0
        %1237 = vadd.xlane.f32.xlu0 %v1236
        %v1238 = vpop.xlane.xlu0 %1237
        %v1239 = vadd.f32 %v1235, %v1238
        %v1240 = vpack.c.bf16 %v1234, %v1234
        %1241 = vrot.lane.b32.xlu0 %v1174, 112
        %v1242 = vpop.permute.xlu0 %1241
        %v1244 = vsel %vm1060, %v1240, 0
        %v1247 = vsel %vm1104, %v1242, 0
        %1249 = vmatpush.bf16.msra.mxu0 0
        %1250 = vmatpush.bf16.msra.mxu0 0
        %1251 = vmatpush.bf16.msra.mxu0 0
        %1252 = vmatpush.bf16.msra.mxu0 0
        %1253 = vmatpush.bf16.msra.mxu0 0
        %1254 = vmatpush.bf16.msra.mxu0 0
        %1255 = vmatpush.bf16.msra.mxu0 0
        %1256 = vmatpush.bf16.msra.mxu0 %v1247
        %1257 = vmatmul.bf16.gmra.mxu0 %v1244
        %v1258 = vpop.f32.mrf.mxu0
        %v1259 = vadd.f32 0.0, %v1258
        %v1260 = vpop.f32.mrf.mxu0
        %1261 = vdwg.mxu0
        %v1262 = vadd.f32 %v1235, %v1259
        %1263 = vrot.lane.b32.xlu0 %v1124, 104
        %v1264 = vpop.permute.xlu0 %1263
        %1265 = vrot.lane.b32.xlu0 %v1129, 104
        %v1266 = vpop.permute.xlu0 %1265
        %v1268 = vsel %vm1060, %v1264, 0
        %v1271 = vsel %vm1060, %v1266, 0
        %1273 = vmatpush.bf16.xpose.msra.mxu0 0
        %1274 = vmatpush.bf16.xpose.msra.mxu0 0
        %1275 = vmatpush.bf16.xpose.msra.mxu0 0
        %1276 = vmatpush.bf16.xpose.msra.mxu0 0
        %1277 = vmatpush.bf16.xpose.msra.mxu0 0
        %1278 = vmatpush.bf16.xpose.msra.mxu0 0
        %1279 = vmatpush.bf16.xpose.msra.mxu0 0
        %1280 = vmatpush.bf16.xpose.msra.mxu0 %v1271
        %1281 = vmatmul.bf16.gmra.mxu0 %v1268
        %v1282 = vpop.f32.mrf.mxu0
        %v1283 = vadd.f32 0.0, %v1282
        %v1284 = vpop.f32.mrf.mxu0
        %1285 = vdwg.mxu0
        %v1286 = vmul.f32 %v1283, 0.35355338
        %v1287 = vsel %vm1059, %v1286, 0.0
        %vm1288 = vcmp.eq.f32.partialorder %v1287, 0.0
        %v1289 = vsel %vm1288, -inf, %v1287
        %v1290 = vsel %vm1060, %v1289, -inf
        %1291 = vmax.xlane.f32.xlu0 %v1290
        %v1292 = vpop.xlane.xlu0 %1291
        %vm1293 = vcmp.eq.f32.partialorder %v1292, -inf
        %v1294 = vsel %vm1293, 0.0, %v1292
        %v1295 = vsub.f32 -inf, %v1294
        %v1296 = vmul.f32 %v1295, 1.442695
        %v1297 = vpow.pop %v1296
        %v1298 = vsub.f32 %v1289, %v1294
        %v1299 = vmul.f32 %v1298, 1.442695
        %v1300 = vpow.pop %v1299
        %v1301 = vmul.f32 %v1297, 0.0
        %v1302 = vsel %vm1060, %v1300, 0.0
        %1303 = vadd.xlane.f32.xlu0 %v1302
        %v1304 = vpop.xlane.xlu0 %1303
        %v1305 = vadd.f32 %v1301, %v1304
        %v1306 = vpack.c.bf16 %v1300, %v1300
        %1307 = vrot.lane.b32.xlu0 %v1174, 104
        %v1308 = vpop.permute.xlu0 %1307
        %v1310 = vsel %vm1060, %v1306, 0
        %v1313 = vsel %vm1104, %v1308, 0
        %1315 = vmatpush.bf16.msra.mxu0 0
        %1316 = vmatpush.bf16.msra.mxu0 0
        %1317 = vmatpush.bf16.msra.mxu0 0
        %1318 = vmatpush.bf16.msra.mxu0 0
        %1319 = vmatpush.bf16.msra.mxu0 0
        %1320 = vmatpush.bf16.msra.mxu0 0
        %1321 = vmatpush.bf16.msra.mxu0 0
        %1322 = vmatpush.bf16.msra.mxu0 %v1313
        %1323 = vmatmul.bf16.gmra.mxu0 %v1310
        %v1324 = vpop.f32.mrf.mxu0
        %v1325 = vadd.f32 0.0, %v1324
        %v1326 = vpop.f32.mrf.mxu0
        %1327 = vdwg.mxu0
        %v1328 = vadd.f32 %v1301, %v1325
        %v1329 = vrcp.pop %v1099
        %v1330 = vmul.f32 %v1121, %v1329
        %1331 = vst.msk [vmem:[#allocation6] sm:$0xff] %vm1060, %v1330
        %v1332 = vrcp.pop %v1170
        %v1333 = vmul.f32 %v1196, %v1332
        %1335 = vrot.lane.b32.xlu0 %v1333, 8
        %v1336 = vpop.permute.xlu0 %1335
        %vm1338 = vcmask 130112
        %1339 = vst.msk [vmem:[#allocation6] sm:$0xff] %vm1338, %v1336
        %v1340 = vrcp.pop %v1239
        %v1341 = vmul.f32 %v1262, %v1340
        %1343 = vrot.lane.b32.xlu0 %v1341, 16
        %v1344 = vpop.permute.xlu0 %1343
        %vm1346 = vcmask 195712
        %1347 = vst.msk [vmem:[#allocation6] sm:$0xff] %vm1346, %v1344
        %v1348 = vrcp.pop %v1305
        %v1349 = vmul.f32 %v1328, %v1348
        %1351 = vrot.lane.b32.xlu0 %v1349, 24
        %v1352 = vpop.permute.xlu0 %1351
        %vm1354 = vcmask 261312
        %1355 = vst.msk [vmem:[#allocation6] sm:$0xff] %vm1354, %v1352
        %v1356 = vld [vmem:[#allocation3 + $0x4] sm:$0xf]
        %v1357 = vld [vmem:[#allocation4 + $0x4] sm:$0xf]
        %v1358 = vld [vmem:[#allocation5 + $0x4] sm:$0xf]
        %v1360 = vsel %vm1060, %v1356, 0
        %v1363 = vsel %vm1060, %v1357, 0
        %1365 = vmatpush.bf16.xpose.msra.mxu0 0
        %1366 = vmatpush.bf16.xpose.msra.mxu0 0
        %1367 = vmatpush.bf16.xpose.msra.mxu0 0
        %1368 = vmatpush.bf16.xpose.msra.mxu0 0
        %1369 = vmatpush.bf16.xpose.msra.mxu0 0
        %1370 = vmatpush.bf16.xpose.msra.mxu0 0
        %1371 = vmatpush.bf16.xpose.msra.mxu0 0
        %1372 = vmatpush.bf16.xpose.msra.mxu0 %v1363
        %1373 = vmatmul.bf16.gmra.mxu0 %v1360
        %v1374 = vpop.f32.mrf.mxu0
        %v1375 = vadd.f32 0.0, %v1374
        %v1376 = vpop.f32.mrf.mxu0
        %1377 = vdwg.mxu0
        %v1378 = vmul.f32 %v1375, 0.35355338
        %v1379 = vsel %vm1059, %v1378, 0.0
        %vm1380 = vcmp.eq.f32.partialorder %v1379, 0.0
        %v1381 = vsel %vm1380, -inf, %v1379
        %v1382 = vsel %vm1060, %v1381, -inf
        %1383 = vmax.xlane.f32.xlu0 %v1382
        %v1384 = vpop.xlane.xlu0 %1383
        %vm1385 = vcmp.eq.f32.partialorder %v1384, -inf
        %v1386 = vsel %vm1385, 0.0, %v1384
        %v1387 = vsub.f32 -inf, %v1386
        %v1388 = vmul.f32 %v1387, 1.442695
        %v1389 = vpow.pop %v1388
        %v1390 = vsub.f32 %v1381, %v1386
        %v1391 = vmul.f32 %v1390, 1.442695
        %v1392 = vpow.pop %v1391
        %v1393 = vmul.f32 %v1389, 0.0
        %v1394 = vsel %vm1060, %v1392, 0.0
        %1395 = vadd.xlane.f32.xlu0 %v1394
        %v1396 = vpop.xlane.xlu0 %1395
        %v1397 = vadd.f32 %v1393, %v1396
        %v1398 = vpack.c.bf16 %v1392, %v1392
        %v1400 = vsel %vm1060, %v1398, 0
        %v1403 = vsel %vm1104, %v1358, 0
        %1405 = vmatpush.bf16.msra.mxu0 0
        %1406 = vmatpush.bf16.msra.mxu0 0
        %1407 = vmatpush.bf16.msra.mxu0 0
        %1408 = vmatpush.bf16.msra.mxu0 0
        %1409 = vmatpush.bf16.msra.mxu0 0
        %1410 = vmatpush.bf16.msra.mxu0 0
        %1411 = vmatpush.bf16.msra.mxu0 0
        %1412 = vmatpush.bf16.msra.mxu0 %v1403
        %1413 = vmatmul.bf16.gmra.mxu0 %v1400
        %v1414 = vpop.f32.mrf.mxu0
        %v1415 = vadd.f32 0.0, %v1414
        %v1416 = vpop.f32.mrf.mxu0
        %1417 = vdwg.mxu0
        %v1418 = vadd.f32 %v1393, %v1415
        %v1420 = vunpack.c.l.b16 %v1356
        %v1421 = vpack.c.b16 %v1420, %v1420
        %1422 = vrot.lane.b32.xlu0 %v1421, 120
        %v1423 = vpop.permute.xlu0 %1422
        %v1425 = vunpack.c.l.b16 %v1357
        %v1426 = vpack.c.b16 %v1425, %v1425
        %1427 = vrot.lane.b32.xlu0 %v1426, 120
        %v1428 = vpop.permute.xlu0 %1427
        %v1430 = vsel %vm1060, %v1423, 0
        %v1433 = vsel %vm1060, %v1428, 0
        %1435 = vmatpush.bf16.xpose.msra.mxu0 0
        %1436 = vmatpush.bf16.xpose.msra.mxu0 0
        %1437 = vmatpush.bf16.xpose.msra.mxu0 0
        %1438 = vmatpush.bf16.xpose.msra.mxu0 0
        %1439 = vmatpush.bf16.xpose.msra.mxu0 0
        %1440 = vmatpush.bf16.xpose.msra.mxu0 0
        %1441 = vmatpush.bf16.xpose.msra.mxu0 0
        %1442 = vmatpush.bf16.xpose.msra.mxu0 %v1433
        %1443 = vmatmul.bf16.gmra.mxu0 %v1430
        %v1444 = vpop.f32.mrf.mxu0
        %v1445 = vadd.f32 0.0, %v1444
        %v1446 = vpop.f32.mrf.mxu0
        %1447 = vdwg.mxu0
        %v1448 = vmul.f32 %v1445, 0.35355338
        %v1449 = vsel %vm1059, %v1448, 0.0
        %vm1450 = vcmp.eq.f32.partialorder %v1449, 0.0
        %v1451 = vsel %vm1450, -inf, %v1449
        %v1452 = vsel %vm1060, %v1451, -inf
        %1453 = vmax.xlane.f32.xlu0 %v1452
        %v1454 = vpop.xlane.xlu0 %1453
        %vm1455 = vcmp.eq.f32.partialorder %v1454, -inf
        %v1456 = vsel %vm1455, 0.0, %v1454
        %v1457 = vsub.f32 -inf, %v1456
        %v1458 = vmul.f32 %v1457, 1.442695
        %v1459 = vpow.pop %v1458
        %v1460 = vsub.f32 %v1451, %v1456
        %v1461 = vmul.f32 %v1460, 1.442695
        %v1462 = vpow.pop %v1461
        %v1463 = vmul.f32 %v1459, 0.0
        %v1464 = vsel %vm1060, %v1462, 0.0
        %1465 = vadd.xlane.f32.xlu0 %v1464
        %v1466 = vpop.xlane.xlu0 %1465
        %v1467 = vadd.f32 %v1463, %v1466
        %v1468 = vpack.c.bf16 %v1462, %v1462
        %v1470 = vunpack.c.l.b16 %v1358
        %v1471 = vpack.c.b16 %v1470, %v1470
        %1472 = vrot.lane.b32.xlu0 %v1471, 120
        %v1473 = vpop.permute.xlu0 %1472
        %v1475 = vsel %vm1060, %v1468, 0
        %v1478 = vsel %vm1104, %v1473, 0
        %1480 = vmatpush.bf16.msra.mxu0 0
        %1481 = vmatpush.bf16.msra.mxu0 0
        %1482 = vmatpush.bf16.msra.mxu0 0
        %1483 = vmatpush.bf16.msra.mxu0 0
        %1484 = vmatpush.bf16.msra.mxu0 0
        %1485 = vmatpush.bf16.msra.mxu0 0
        %1486 = vmatpush.bf16.msra.mxu0 0
        %1487 = vmatpush.bf16.msra.mxu0 %v1478
        %1488 = vmatmul.bf16.gmra.mxu0 %v1475
        %v1489 = vpop.f32.mrf.mxu0
        %v1490 = vadd.f32 0.0, %v1489
        %v1491 = vpop.f32.mrf.mxu0
        %1492 = vdwg.mxu0
        %v1493 = vadd.f32 %v1463, %v1490
        %1494 = vrot.lane.b32.xlu0 %v1421, 112
        %v1495 = vpop.permute.xlu0 %1494
        %1496 = vrot.lane.b32.xlu0 %v1426, 112
        %v1497 = vpop.permute.xlu0 %1496
        %v1499 = vsel %vm1060, %v1495, 0
        %v1502 = vsel %vm1060, %v1497, 0
        %1504 = vmatpush.bf16.xpose.msra.mxu0 0
        %1505 = vmatpush.bf16.xpose.msra.mxu0 0
        %1506 = vmatpush.bf16.xpose.msra.mxu0 0
        %1507 = vmatpush.bf16.xpose.msra.mxu0 0
        %1508 = vmatpush.bf16.xpose.msra.mxu0 0
        %1509 = vmatpush.bf16.xpose.msra.mxu0 0
        %1510 = vmatpush.bf16.xpose.msra.mxu0 0
        %1511 = vmatpush.bf16.xpose.msra.mxu0 %v1502
        %1512 = vmatmul.bf16.gmra.mxu0 %v1499
        %v1513 = vpop.f32.mrf.mxu0
        %v1514 = vadd.f32 0.0, %v1513
        %v1515 = vpop.f32.mrf.mxu0
        %1516 = vdwg.mxu0
        %v1517 = vmul.f32 %v1514, 0.35355338
        %v1518 = vsel %vm1059, %v1517, 0.0
        %vm1519 = vcmp.eq.f32.partialorder %v1518, 0.0
        %v1520 = vsel %vm1519, -inf, %v1518
        %v1521 = vsel %vm1060, %v1520, -inf
        %1522 = vmax.xlane.f32.xlu0 %v1521
        %v1523 = vpop.xlane.xlu0 %1522
        %vm1524 = vcmp.eq.f32.partialorder %v1523, -inf
        %v1525 = vsel %vm1524, 0.0, %v1523
        %v1526 = vsub.f32 -inf, %v1525
        %v1527 = vmul.f32 %v1526, 1.442695
        %v1528 = vpow.pop %v1527
        %v1529 = vsub.f32 %v1520, %v1525
        %v1530 = vmul.f32 %v1529, 1.442695
        %v1531 = vpow.pop %v1530
        %v1532 = vmul.f32 %v1528, 0.0
        %v1533 = vsel %vm1060, %v1531, 0.0
        %1534 = vadd.xlane.f32.xlu0 %v1533
        %v1535 = vpop.xlane.xlu0 %1534
        %v1536 = vadd.f32 %v1532, %v1535
        %v1537 = vpack.c.bf16 %v1531, %v1531
        %1538 = vrot.lane.b32.xlu0 %v1471, 112
        %v1539 = vpop.permute.xlu0 %1538
        %v1541 = vsel %vm1060, %v1537, 0
        %v1544 = vsel %vm1104, %v1539, 0
        %1546 = vmatpush.bf16.msra.mxu0 0
        %1547 = vmatpush.bf16.msra.mxu0 0
        %1548 = vmatpush.bf16.msra.mxu0 0
        %1549 = vmatpush.bf16.msra.mxu0 0
        %1550 = vmatpush.bf16.msra.mxu0 0
        %1551 = vmatpush.bf16.msra.mxu0 0
        %1552 = vmatpush.bf16.msra.mxu0 0
        %1553 = vmatpush.bf16.msra.mxu0 %v1544
        %1554 = vmatmul.bf16.gmra.mxu0 %v1541
        %v1555 = vpop.f32.mrf.mxu0
        %v1556 = vadd.f32 0.0, %v1555
        %v1557 = vpop.f32.mrf.mxu0
        %1558 = vdwg.mxu0
        %v1559 = vadd.f32 %v1532, %v1556
        %1560 = vrot.lane.b32.xlu0 %v1421, 104
        %v1561 = vpop.permute.xlu0 %1560
        %1562 = vrot.lane.b32.xlu0 %v1426, 104
        %v1563 = vpop.permute.xlu0 %1562
        %v1565 = vsel %vm1060, %v1561, 0
        %v1568 = vsel %vm1060, %v1563, 0
        %1570 = vmatpush.bf16.xpose.msra.mxu0 0
        %1571 = vmatpush.bf16.xpose.msra.mxu0 0
        %1572 = vmatpush.bf16.xpose.msra.mxu0 0
        %1573 = vmatpush.bf16.xpose.msra.mxu0 0
        %1574 = vmatpush.bf16.xpose.msra.mxu0 0
        %1575 = vmatpush.bf16.xpose.msra.mxu0 0
        %1576 = vmatpush.bf16.xpose.msra.mxu0 0
        %1577 = vmatpush.bf16.xpose.msra.mxu0 %v1568
        %1578 = vmatmul.bf16.gmra.mxu0 %v1565
        %v1579 = vpop.f32.mrf.mxu0
        %v1580 = vadd.f32 0.0, %v1579
        %v1581 = vpop.f32.mrf.mxu0
        %1582 = vdwg.mxu0
        %v1583 = vmul.f32 %v1580, 0.35355338
        %v1584 = vsel %vm1059, %v1583, 0.0
        %vm1585 = vcmp.eq.f32.partialorder %v1584, 0.0
        %v1586 = vsel %vm1585, -inf, %v1584
        %v1587 = vsel %vm1060, %v1586, -inf
        %1588 = vmax.xlane.f32.xlu0 %v1587
        %v1589 = vpop.xlane.xlu0 %1588
        %vm1590 = vcmp.eq.f32.partialorder %v1589, -inf
        %v1591 = vsel %vm1590, 0.0, %v1589
        %v1592 = vsub.f32 -inf, %v1591
        %v1593 = vmul.f32 %v1592, 1.442695
        %v1594 = vpow.pop %v1593
        %v1595 = vsub.f32 %v1586, %v1591
        %v1596 = vmul.f32 %v1595, 1.442695
        %v1597 = vpow.pop %v1596
        %v1598 = vmul.f32 %v1594, 0.0
        %v1599 = vsel %vm1060, %v1597, 0.0
        %1600 = vadd.xlane.f32.xlu0 %v1599
        %v1601 = vpop.xlane.xlu0 %1600
        %v1602 = vadd.f32 %v1598, %v1601
        %v1603 = vpack.c.bf16 %v1597, %v1597
        %1604 = vrot.lane.b32.xlu0 %v1471, 104
        %v1605 = vpop.permute.xlu0 %1604
        %v1607 = vsel %vm1060, %v1603, 0
        %v1610 = vsel %vm1104, %v1605, 0
        %1612 = vmatpush.bf16.msra.mxu0 0
        %1613 = vmatpush.bf16.msra.mxu0 0
        %1614 = vmatpush.bf16.msra.mxu0 0
        %1615 = vmatpush.bf16.msra.mxu0 0
        %1616 = vmatpush.bf16.msra.mxu0 0
        %1617 = vmatpush.bf16.msra.mxu0 0
        %1618 = vmatpush.bf16.msra.mxu0 0
        %1619 = vmatpush.bf16.msra.mxu0 %v1610
        %1620 = vmatmul.bf16.gmra.mxu0 %v1607
        %v1621 = vpop.f32.mrf.mxu0
        %v1622 = vadd.f32 0.0, %v1621
        %v1623 = vpop.f32.mrf.mxu0
        %1624 = vdwg.mxu0
        %v1625 = vadd.f32 %v1598, %v1622
        %v1626 = vrcp.pop %v1397
        %v1627 = vmul.f32 %v1418, %v1626
        %1628 = vst.msk [vmem:[#allocation6 + $0x8] sm:$0xff] %vm1060, %v1627
        %v1629 = vrcp.pop %v1467
        %v1630 = vmul.f32 %v1493, %v1629
        %1632 = vrot.lane.b32.xlu0 %v1630, 8
        %v1633 = vpop.permute.xlu0 %1632
        %1635 = vst.msk [vmem:[#allocation6 + $0x8] sm:$0xff] %vm1338, %v1633
        %v1636 = vrcp.pop %v1536
        %v1637 = vmul.f32 %v1559, %v1636
        %1639 = vrot.lane.b32.xlu0 %v1637, 16
        %v1640 = vpop.permute.xlu0 %1639
        %1642 = vst.msk [vmem:[#allocation6 + $0x8] sm:$0xff] %vm1346, %v1640
        %v1643 = vrcp.pop %v1602
        %v1644 = vmul.f32 %v1625, %v1643
        %1646 = vrot.lane.b32.xlu0 %v1644, 24
        %v1647 = vpop.permute.xlu0 %1646
        %1649 = vst.msk [vmem:[#allocation6 + $0x8] sm:$0xff] %vm1354, %v1647
        %v1650 = vld [vmem:[#allocation6] sm:$0xff]
        %v1651 = vld [vmem:[#allocation6 + $0x8] sm:$0xff]
        %v1652 = vpack.c.bf16 %v1651, %v1650
        %v1653 = vld [vmem:[%s744] sm:$0xf]
        %v1654 = vld [vmem:[%s744 + $0x4] sm:$0xf]
        %v1655 = vld [vmem:[%s744 + $0x8] sm:$0xf]
        %v1656 = vld [vmem:[%s744 + $0xc] sm:$0xf]
        %v1657 = vld [vmem:[%s901] sm:$0x1]
        %v1659 = vperm.slane %v1657, 0
        %v1665 = vunpack.c.l.b16 %v1653
        %v1666 = vunpack.c.l.b16 %v1654
        %v1667 = vunpack.c.l.b16 %v1655
        %v1668 = vunpack.c.l.b16 %v1656
        %v1669 = vpack.c.b16 %v1666, %v1665
        %v1670 = vpack.c.b16 %v1668, %v1667
        %v1674 = vsel %vm953, %v1652, 0
        %1676 = vmatpush.bf16.msra.mxu0 0
        %1677 = vmatpush.bf16.msra.mxu0 0
        %1678 = vmatpush.bf16.msra.mxu0 0
        %1679 = vmatpush.bf16.msra.mxu0 0
        %1680 = vmatpush.bf16.msra.mxu0 0
        %1681 = vmatpush.bf16.msra.mxu0 0
        %1682 = vmatpush.bf16.msra.mxu0 %v1670
        %1683 = vmatpush.bf16.msra.mxu0 %v1669
        %1684 = vmatmul.bf16.gmra.mxu0 %v1674
        %v1685 = vpop.f32.mrf.mxu0
        %v1686 = vadd.f32 %v1659, %v1685
        %v1687 = vpop.f32.mrf.mxu0
        %v1688 = vadd.f32 %v1659, %v1687
        %1689 = vdwg.mxu0
        %v1690 = vld [vmem:[#allocation2] sm:$0xff]
        %v1691 = vld [vmem:[#allocation2 + $0x8] sm:$0xff]
        %v1692 = vadd.f32 %v1690, %v1686
        %v1693 = vadd.f32 %v1691, %v1688
        %v1694 = vsel %vm953, %v1692, 0.0
        %1695 = vadd.xlane.f32.xlu0 %v1694
        %v1696 = vpop.xlane.xlu0 %1695
        %v1697 = vsel %vm953, %v1693, 0.0
        %1698 = vadd.xlane.f32.xlu0 %v1697
        %v1699 = vpop.xlane.xlu0 %1698
        %v1700 = vrcp.pop 32.0
        %v1701 = vmul.f32 32.0, %v1700
        %v1702 = vsub.f32 1.0, %v1701
        %v1703 = vmul.f32 %v1700, %v1702
        %v1704 = vadd.f32 %v1700, %v1703
        %vm1705 = vweird.f32 %v1700
        %v1706 = vsel %vm1705, %v1700, %v1704
        %v1707 = vmul.f32 %v1696, %v1706
        %v1708 = vmul.f32 %v1699, %v1706
        %v1709 = vsub.f32 %v1692, %v1707
        %v1710 = vsub.f32 %v1693, %v1708
        %v1711 = vmul.f32 %v1709, %v1709
        %v1712 = vmul.f32 %v1710, %v1710
        %v1713 = vsel %vm953, %v1711, 0.0
        %1714 = vadd.xlane.f32.xlu0 %v1713
        %v1715 = vpop.xlane.xlu0 %1714
        %v1716 = vsel %vm953, %v1712, 0.0
        %1717 = vadd.xlane.f32.xlu0 %v1716
        %v1718 = vpop.xlane.xlu0 %1717
        %v1719 = vmul.f32 %v1715, %v1706
        %v1720 = vmul.f32 %v1718, %v1706
        %v1721 = vadd.f32 %v1719, 1e-05
        %v1722 = vadd.f32 %v1720, 1e-05
        %v1723 = vrsqrt.pop %v1721
        %v1724 = vmul.f32 %v1723, %v1721
        %v1725 = vmul.f32 %v1724, %v1723
        %v1726 = vmul.f32 0.5, %v1725
        %v1727 = vsub.f32 1.5, %v1726
        %v1728 = vmul.f32 %v1723, %v1727
        %vm1729 = vweird.f32 %v1721
        %vm1730 = vweird.f32 %v1723
        %vm1731 = vmor %vm1729, %vm1730
        %v1732 = vsel %vm1731, %v1723, %v1728
        %v1733 = vrsqrt.pop %v1722
        %v1734 = vmul.f32 %v1733, %v1722
        %v1735 = vmul.f32 %v1734, %v1733
        %v1736 = vmul.f32 0.5, %v1735
        %v1737 = vsub.f32 1.5, %v1736
        %v1738 = vmul.f32 %v1733, %v1737
        %vm1739 = vweird.f32 %v1722
        %vm1740 = vweird.f32 %v1733
        %vm1741 = vmor %vm1739, %vm1740
        %v1742 = vsel %vm1741, %v1733, %v1738
        %v1743 = vmul.f32 %v1709, %v1732
        %v1744 = vmul.f32 %v1710, %v1742
        %v1745 = vld [vmem:[%s753] sm:$0x1]
        %v1747 = vperm.slane %v1745, 0
        %v1749 = vmul.f32 %v1743, %v1747
        %v1750 = vmul.f32 %v1744, %v1747
        %v1751 = vld [vmem:[%s904] sm:$0x1]
        %v1753 = vperm.slane %v1751, 0
        %v1755 = vadd.f32 %v1749, %v1753
        %v1756 = vadd.f32 %v1750, %v1753
        %1757 = vst.msk [vmem:[#allocation2] sm:$0xff] %vm953, %v1755
        %1758 = vst.msk [vmem:[#allocation2 + $0x8] sm:$0xff] %vm953, %v1756
        %v1759 = vpack.c.bf16 %v1756, %v1755
        %v1760 = vld [vmem:[%s763] sm:$0xf]
        %v1761 = vld [vmem:[%s763 + $0x4] sm:$0xf]
        %v1762 = vld [vmem:[%s763 + $0x8] sm:$0xf]
        %v1763 = vld [vmem:[%s763 + $0xc] sm:$0xf]
        %v1764 = vld [vmem:[%s907] sm:$0x1]
        %v1766 = vperm.slane %v1764, 0
        %v1772 = vunpack.c.l.b16 %v1760
        %v1773 = vunpack.c.l.b16 %v1761
        %v1774 = vunpack.c.l.b16 %v1762
        %v1775 = vunpack.c.l.b16 %v1763
        %v1776 = vpack.c.b16 %v1773, %v1772
        %v1777 = vpack.c.b16 %v1775, %v1774
        %v1781 = vsel %vm953, %v1759, 0
        %1783 = vmatpush.bf16.msra.mxu0 0
        %1784 = vmatpush.bf16.msra.mxu0 0
        %1785 = vmatpush.bf16.msra.mxu0 0
        %1786 = vmatpush.bf16.msra.mxu0 0
        %1787 = vmatpush.bf16.msra.mxu0 0
        %1788 = vmatpush.bf16.msra.mxu0 0
        %1789 = vmatpush.bf16.msra.mxu0 %v1777
        %1790 = vmatpush.bf16.msra.mxu0 %v1776
        %1791 = vmatmul.bf16.gmra.mxu0 %v1781
        %v1792 = vpop.f32.mrf.mxu0
        %v1793 = vadd.f32 %v1766, %v1792
        %v1794 = vpop.f32.mrf.mxu0
        %v1795 = vadd.f32 %v1766, %v1794
        %1796 = vdwg.mxu0
        %v1797 = vmax.f32 %v1793, 0.0
        %v1798 = vmax.f32 %v1795, 0.0
        %v1799 = vpack.c.bf16 %v1798, %v1797
        %v1800 = vld [vmem:[%s912] sm:$0xf]
        %v1801 = vld [vmem:[%s912 + $0x4] sm:$0xf]
        %v1802 = vld [vmem:[%s912 + $0x8] sm:$0xf]
        %v1803 = vld [vmem:[%s912 + $0xc] sm:$0xf]
        %v1804 = vld [vmem:[%s912 + $0x10] sm:$0xf]
        %v1805 = vld [vmem:[%s912 + $0x14] sm:$0xf]
        %v1806 = vld [vmem:[%s912 + $0x18] sm:$0xf]
        %v1807 = vld [vmem:[%s912 + $0x1c] sm:$0xf]
        %v1808 = vld [vmem:[%s915] sm:$0x1]
        %v1810 = vperm.slane %v1808, 0
        %v1820 = vunpack.c.l.b16 %v1800
        %v1821 = vunpack.c.l.b16 %v1801
        %v1822 = vunpack.c.l.b16 %v1802
        %v1823 = vunpack.c.l.b16 %v1803
        %v1824 = vunpack.c.l.b16 %v1804
        %v1825 = vunpack.c.l.b16 %v1805
        %v1826 = vunpack.c.l.b16 %v1806
        %v1827 = vunpack.c.l.b16 %v1807
        %v1828 = vpack.c.b16 %v1821, %v1820
        %v1829 = vpack.c.b16 %v1823, %v1822
        %v1830 = vpack.c.b16 %v1825, %v1824
        %v1831 = vpack.c.b16 %v1827, %v1826
        %vm1836 = vcmask 523264
        %v1838 = vsel %vm1836, %v1799, 0
        %1840 = vmatpush.bf16.msra.mxu0 0
        %1841 = vmatpush.bf16.msra.mxu0 0
        %1842 = vmatpush.bf16.msra.mxu0 0
        %1843 = vmatpush.bf16.msra.mxu0 0
        %1844 = vmatpush.bf16.msra.mxu0 %v1831
        %1845 = vmatpush.bf16.msra.mxu0 %v1830
        %1846 = vmatpush.bf16.msra.mxu0 %v1829
        %1847 = vmatpush.bf16.msra.mxu0 %v1828
        %1848 = vmatmul.bf16.gmra.mxu0 %v1838
        %v1849 = vpop.f32.mrf.mxu0
        %v1850 = vadd.f32 %v1810, %v1849
        %v1851 = vpop.f32.mrf.mxu0
        %v1852 = vadd.f32 %v1810, %v1851
        %1853 = vdwg.mxu0
        %v1854 = vld [vmem:[#allocation2] sm:$0xff]
        %v1855 = vld [vmem:[#allocation2 + $0x8] sm:$0xff]
        %v1856 = vadd.f32 %v1854, %v1850
        %v1857 = vadd.f32 %v1855, %v1852
        %v1858 = vsel %vm953, %v1856, 0.0
        %1859 = vadd.xlane.f32.xlu0 %v1858
        %v1860 = vpop.xlane.xlu0 %1859
        %v1861 = vsel %vm953, %v1857, 0.0
        %1862 = vadd.xlane.f32.xlu0 %v1861
        %v1863 = vpop.xlane.xlu0 %1862
        %v1864 = vmul.f32 %v1860, %v1706
        %v1865 = vmul.f32 %v1863, %v1706
        %v1866 = vsub.f32 %v1856, %v1864
        %v1867 = vsub.f32 %v1857, %v1865
        %v1868 = vmul.f32 %v1866, %v1866
        %v1869 = vmul.f32 %v1867, %v1867
        %v1870 = vsel %vm953, %v1868, 0.0
        %1871 = vadd.xlane.f32.xlu0 %v1870
        %v1872 = vpop.xlane.xlu0 %1871
        %v1873 = vsel %vm953, %v1869, 0.0
        %1874 = vadd.xlane.f32.xlu0 %v1873
        %v1875 = vpop.xlane.xlu0 %1874
        %v1876 = vmul.f32 %v1872, %v1706
        %v1877 = vmul.f32 %v1875, %v1706
        %v1878 = vadd.f32 %v1876, 1e-05
        %v1879 = vadd.f32 %v1877, 1e-05
        %v1880 = vrsqrt.pop %v1878
        %v1881 = vmul.f32 %v1880, %v1878
        %v1882 = vmul.f32 %v1881, %v1880
        %v1883 = vmul.f32 0.5, %v1882
        %v1884 = vsub.f32 1.5, %v1883
        %v1885 = vmul.f32 %v1880, %v1884
        %vm1886 = vweird.f32 %v1878
        %vm1887 = vweird.f32 %v1880
        %vm1888 = vmor %vm1886, %vm1887
        %v1889 = vsel %vm1888, %v1880, %v1885
        %v1890 = vrsqrt.pop %v1879
        %v1891 = vmul.f32 %v1890, %v1879
        %v1892 = vmul.f32 %v1891, %v1890
        %v1893 = vmul.f32 0.5, %v1892
        %v1894 = vsub.f32 1.5, %v1893
        %v1895 = vmul.f32 %v1890, %v1894
        %vm1896 = vweird.f32 %v1879
        %vm1897 = vweird.f32 %v1890
        %vm1898 = vmor %vm1896, %vm1897
        %v1899 = vsel %vm1898, %v1890, %v1895
        %v1900 = vmul.f32 %v1866, %v1889
        %v1901 = vmul.f32 %v1867, %v1899
        %v1902 = vld [vmem:[%s772] sm:$0x1]
        %v1904 = vperm.slane %v1902, 0
        %v1906 = vmul.f32 %v1900, %v1904
        %v1907 = vmul.f32 %v1901, %v1904
        %v1908 = vld [vmem:[%s918] sm:$0x1]
        %v1910 = vperm.slane %v1908, 0
        %v1912 = vadd.f32 %v1906, %v1910
        %v1913 = vadd.f32 %v1907, %v1910
        %1914 = vst.msk [vmem:[#allocation2] sm:$0xff] %vm953, %v1912
        %1915 = vst.msk [vmem:[#allocation2 + $0x8] sm:$0xff] %vm953, %v1913
        %p1916 = scmp.eq.s32.totalorder %s44, 1
        // Predicated region
        $region117: #{tpu_custom_call.1} parent=87 // pred_check
          %p1917 = pneg %p1916
        $region118: #{tpu_custom_call.1} parent=87 // pred_check_branch
          %1919 = sbr.rel (%p1917) target = $region120
        $region119: #{tpu_custom_call.1} parent=87 // pred_region
          %1920 = vst.msk [vmem:[#allocation18] sm:$0xff] %vm953, %v1912
          %1921 = vst.msk [vmem:[#allocation18 + $0x8] sm:$0xff] %vm953, %v1913
        $region120: #{tpu_custom_call.1} parent=87 // pred_fallthru
          _
        // Predicated region
        $region121: #{tpu_custom_call.1} parent=87 // pred_check
          %p1922 = pneg %p511
        $region122: #{tpu_custom_call.1} parent=87 // pred_check_branch
          %1924 = sbr.rel (%p1922) target = $region124
        $region123: #{tpu_custom_call.1} parent=87 // pred_region
          %s1925 = smul.u32 2, %s43
          %1927 = vsyncadd [#allocation9], 0
          %s1928 = smul.addr %s1925, 8
          %s1929 = scalar_lea.hbm %s17, %s1928
          %s1930 = sshll.u32 [#allocation18], 4
          %s1931 = int_to_ptr.vmem [resolvable:$true] %s1930
          %s1932 = sshll.u32 %s1929, 4
          %s1933 = int_to_ptr.hbm [resolvable:$true] %s1932
          %1938 = dma.vmem_to_hbm [thread:$0]  %s1931, 256, %s1933, [#allocation9], 128, 128, 8
        $region124: #{tpu_custom_call.1} parent=87 // pred_fallthru
          _
        // Predicated region
        $region125: #{tpu_custom_call.1} parent=87 // pred_check
          %p1939 = pneg %p511
        $region126: #{tpu_custom_call.1} parent=87 // pred_check_branch
          %1941 = sbr.rel (%p1939) target = $region128
        $region127: #{tpu_custom_call.1} parent=87 // pred_region
          %1943 = dma.done [#allocation9], 256
        $region128: #{tpu_custom_call.1} parent=87 // pred_fallthru
          _
      $region88: #{tpu_custom_call.1} parent=5 // pred_fallthru
        _
      %p1944 = scmp.le.s32.totalorder 2, %s34
      // Predicated region
      $region129: #{tpu_custom_call.1} parent=5 // pred_check
        %p1945 = pneg %p1944
      $region130: #{tpu_custom_call.1} parent=5 // pred_check_branch
        %1947 = sbr.rel (%p1945) target = $region132
      $region131: #{tpu_custom_call.1} parent=5 // pred_region
        %s1948 = ssub.s32 %s34, 2
      $region132: #{tpu_custom_call.1} parent=5 // pred_fallthru
        _
    $region6: #{tpu_custom_call.1} parent=1 // loop_footer
      %s38 = sadd.s32 1, %s34
    $region7: #{tpu_custom_call.1} parent=1 // loop_footer_branch
      %33 = sbr.rel target = $region3
    $region8: #{tpu_custom_call.1} parent=1 // loop_exit
      _
    %1949 = vsyncpa [#allocation8], 1
    %s1950 = scalar_lea.sflag [#allocation8], 1
    %1951 = vsyncpa %s1950, 1
    %1952 = vsyncpa [#allocation11], 1
    %s1953 = scalar_lea.sflag [#allocation11], 1
    %1954 = vsyncpa %s1953, 1
    %1955 = vsyncpa [#allocation14], 1
    %s1956 = scalar_lea.sflag [#allocation14], 1
    %1957 = vsyncpa %s1956, 1
    %1958 = vsyncpa [#allocation17], 1
    %s1959 = scalar_lea.sflag [#allocation17], 1
    %1960 = vsyncpa %s1959, 1
    %1961 = vsyncpa [#allocation9], 1
    %s1962 = scalar_lea.sflag [#allocation9], 1
    %1963 = vsyncpa %s1962, 1

</llo_original>
